<compile_context>
chip_gen: v7x
topology: tpu7x:2x2x1
jax: 0.10.0
libtpu: 0.0.40
codegen_flags: <defaults>
</compile_context>

<pallas_src>
import functools

import jax
import jax.numpy as jnp
import numpy as np
from jax import lax
from jax.experimental import pallas as pl
from jax.experimental.pallas import tpu as pltpu


# ----------------------------------------------------------------------------------------------
# Fused kernel: BN stats + affine + ReLU + 3x3 same conv (VPU) + residual, single grid step.
# Folded layout: lane = n*W*C + w*C + c (channels minor), sublanes = H.
# ----------------------------------------------------------------------------------------------
def _preact_kernel(x_ref, gamma_ref, beta_ref, wv_ref, out_ref, pad_ref, *,
                   N, C, H, W, PADL, eps):
    NWC = N * W * C
    WP = NWC + 2 * PADL

    x = x_ref[...]                                            # (H, NWC) f32, whole batch resident

    # --- Phase A: BatchNorm batch statistics (training mode, biased variance), fully in-kernel -
    # Per-channel reduction over lanes via an exact-f32 shift-add tree: after log2(N*W) doubling
    # rolls every lane holds the total of its own channel class (lane % C), already per-lane for
    # the fused affine.  Mean first, then E[(x-mean)^2]: avoids E[x^2]-mean^2 cancellation.
    def channel_allreduce(row):                               # row: (1, NWC)
        step = C
        while step < NWC:                                     # static Python loop (5 iterations)
            row = row + pltpu.roll(row, shift=step, axis=1)   # XLU lane rotate (direction-agnostic)
            step *= 2
        return row

    inv_cnt = 1.0 / float(N * H * W)
    mean = channel_allreduce(jnp.sum(x, axis=0, keepdims=True)) * inv_cnt        # (1, NWC)
    xm = x - mean
    var = channel_allreduce(jnp.sum(xm * xm, axis=0, keepdims=True)) * inv_cnt   # (1, NWC)

    bn_scale = gamma_ref[...] * lax.rsqrt(var + eps)          # (1, NWC) fused BN affine
    bn_shift = beta_ref[...] - mean * bn_scale
    a = jnp.maximum(x * bn_scale + bn_shift, 0.0)             # BN + ReLU, (H, NWC)

    # --- Phase B: padded activation scratch; zero only the halo, write the interior once -------
    pad_ref[0:1, :] = jnp.zeros((1, WP), jnp.float32)                       # top row halo
    pad_ref[H + 1:H + 2, :] = jnp.zeros((1, WP), jnp.float32)               # bottom row halo
    pad_ref[:, 0:PADL] = jnp.zeros((H + 2, PADL), jnp.float32)              # left lane halo
    pad_ref[:, PADL + NWC:WP] = jnp.zeros((H + 2, PADL), jnp.float32)       # right lane halo
    pad_ref[1:H + 1, PADL:PADL + NWC] = a                                   # interior, exactly once

    # --- Phase C: 3x3 "same" conv on the VPU + residual ----------------------------------------
    # For C = Cin = Cout = 4 the conv is pure VPU work: one lane-shifted column window per
    # distinct lane offset (4C-1 = 15 of them), loaded once and reused for the three ky taps,
    # each multiplied by a precomputed per-lane weight vector in which every (kx, channel-offset)
    # pair sharing that lane offset is merged and out-of-image taps are zeroed.  45 FMAs total.
    # The (1, NWC) weight-row load + sublane splat happens once per *call* (single grid step);
    # on a multi-step grid a stride-0 sublane-broadcast load (wv_ref[pl.ds(k, H, stride=0), :])
    # would move the splat into the otherwise idle vld slot.
    acc = x                                                   # residual: out = x + conv(relu(bn(x)))
    k = 0
    for off in range(-(2 * C - 1), 2 * C):                    # static loop over lane offsets
        colwin = pad_ref[:, PADL + off:PADL + off + NWC]      # (H+2, NWC): one lane-shifted load
        for ky in range(3):
            acc = acc + colwin[ky:ky + H, :] * wv_ref[k:k + 1, :]
            k += 1

    out_ref[...] = acc.astype(out_ref.dtype)


# ----------------------------------------------------------------------------------------------
# Host-side helpers (parameter-only work, done once per call; hoistable in a real model).
# ----------------------------------------------------------------------------------------------
def _conv_weight_vectors(w_oihw, N, W):
    """Per-lane conv weight vectors for the folded (H, N*W*C) layout (lane = n*W*C + w*C + c).

    Row 3*off_idx + ky holds, at lane L, the weight that multiplies the activation at lane
    L + off (rows shifted by ky-1), where off = offs[off_idx].  Taps whose source pixel falls
    outside the image / in another image / outside the folded slab get weight 0.
    """
    Cout, Cin, KH, KW = w_oihw.shape
    assert (KH, KW) == (3, 3) and Cout == Cin
    C = Cin
    NWC = N * W * C
    lanes = np.arange(NWC)
    n_l = lanes // (W * C)
    w_l = (lanes // C) % W
    c_l = lanes % C

    offs = np.arange(-(2 * C - 1), 2 * C)                      # (4C-1,) distinct lane offsets
    src = lanes[None, :] + offs[:, None]                       # (NOFF, NWC) un-padded source lane
    in_range = (src >= 0) & (src < NWC)
    srcc = np.clip(src, 0, NWC - 1)
    n_s = srcc // (W * C)
    w_s = (srcc // C) % W
    c_s = srcc % C
    valid = in_range & (n_s == n_l[None, :]) & (np.abs(w_s - w_l[None, :]) <= 1)
    kx = np.where(valid, w_s - w_l[None, :] + 1, 0)            # kernel x index 0..2
    ci = np.where(valid, c_s, 0)
    co = np.broadcast_to(c_l[None, :], ci.shape)

    noff = offs.shape[0]
    ky = np.arange(3).reshape(1, 3, 1)
    kx3 = np.broadcast_to(kx[:, None, :], (noff, 3, NWC))
    ci3 = np.broadcast_to(ci[:, None, :], (noff, 3, NWC))
    co3 = np.broadcast_to(co[:, None, :], (noff, 3, NWC))
    mask3 = np.broadcast_to(valid[:, None, :], (noff, 3, NWC)).astype(np.float32)

    w_khkwio = jnp.transpose(w_oihw.astype(jnp.float32), (2, 3, 1, 0))   # (ky, kx, ci, co)
    wv = w_khkwio[ky, kx3, ci3, co3] * mask3                   # single gather, (NOFF, 3, NWC)
    return wv.reshape(3 * noff, NWC)


def _vmem_limit_bytes():
    """Per-generation scoped-VMEM limit (v7x has 64 MiB physical vs 128 MiB on v5e/v6e)."""
    try:
        info = pltpu.get_tpu_info()
        cap = getattr(info, "vmem_capacity_bytes", None)
        if cap:
            return int(min(64 << 20, max(16 << 20, cap // 2)))
    except Exception:
        pass
    return 32 << 20


def preact_block(x_nchw, w_oihw, gamma, beta, *, eps=1e-5):
    """x_nchw: (N, C, H, W); w_oihw: (C, C, 3, 3); gamma/beta: (C,).  Returns NCHW (f32)."""
    N, C, H, W = x_nchw.shape
    assert w_oihw.shape == (C, C, 3, 3), "kernel is specialized to 3x3, stride 1, Cout == Cin"
    assert (N * W) > 0 and ((N * W) & (N * W - 1)) == 0, \
        "in-kernel stats tree needs N*W to be a power of two"
    NWC = N * W * C                              # 128 for the test shape -> fully lane-dense
    PADL = 8                                     # lane halo (>= 2C-1) on each side of the slab
    n_rows = 3 * (4 * C - 1)                     # 45 merged conv taps

    # Fold NCHW -> (H, N*W*C), lane = n*W*C + w*C + c (channels minor).
    x_f = jnp.transpose(x_nchw.astype(jnp.float32), (2, 0, 3, 1)).reshape(H, NWC)
    gamma_f = jnp.tile(gamma.astype(jnp.float32), N * W).reshape(1, NWC)
    beta_f = jnp.tile(beta.astype(jnp.float32), N * W).reshape(1, NWC)
    wv = _conv_weight_vectors(w_oihw, N, W)                    # (45, NWC)

    kernel = functools.partial(_preact_kernel, N=N, C=C, H=H, W=W, PADL=PADL, eps=eps)
    out_f = pl.pallas_call(
        kernel,
        out_shape=jax.ShapeDtypeStruct((H, NWC), jnp.float32),
        grid=(1,),                                             # single step: everything resident
        in_specs=[
            pl.BlockSpec((H, NWC), lambda i: (0, 0)),          # folded activations
            pl.BlockSpec((1, NWC), lambda i: (0, 0)),          # per-lane gamma
            pl.BlockSpec((1, NWC), lambda i: (0, 0)),          # per-lane beta
            pl.BlockSpec((n_rows, NWC), lambda i: (0, 0)),     # per-lane conv weight vectors
        ],
        out_specs=pl.BlockSpec((H, NWC), lambda i: (0, 0)),
        scratch_shapes=[pltpu.VMEM((H + 2, NWC + 2 * PADL), jnp.float32)],
        compiler_params=pltpu.CompilerParams(
            dimension_semantics=("arbitrary",),
            vmem_limit_bytes=_vmem_limit_bytes()),
        cost_estimate=pl.CostEstimate(
            flops=2 * N * H * W * 9 * C * C + 10 * N * H * W * C,
            transcendentals=NWC,
            bytes_accessed=(2 * H * NWC + n_rows * NWC + 2 * NWC) * 4),
    )(x_f, gamma_f, beta_f, wv)

    # Unfold back to the module's NCHW convention.
    return jnp.transpose(out_f.reshape(H, N, W, C), (1, 3, 0, 2))


# ----------------------------------------------------------------------------------------------
# Pure-JAX reference mirroring the PyTorch forward (training-mode BN, biased variance).
# ----------------------------------------------------------------------------------------------
def _reference(x_nchw, w_oihw, gamma, beta, eps=1e-5):
    x = jnp.transpose(x_nchw, (0, 2, 3, 1)).astype(jnp.float32)          # NHWC
    mean = jnp.mean(x, axis=(0, 1, 2), keepdims=True)
    var = jnp.mean((x - mean) ** 2, axis=(0, 1, 2), keepdims=True)
    a = gamma.reshape(1, 1, 1, -1) * (x - mean) * lax.rsqrt(var + eps) \
        + beta.reshape(1, 1, 1, -1)
    a = jnp.maximum(a, 0.0)
    w_hwio = jnp.transpose(w_oihw, (2, 3, 1, 0)).astype(jnp.float32)     # HWIO
    z = lax.conv_general_dilated(a, w_hwio, window_strides=(1, 1), padding="SAME",
                                 dimension_numbers=("NHWC", "HWIO", "NHWC"),
                                 precision=lax.Precision.HIGHEST)
    return jnp.transpose(z + x, (0, 3, 1, 2))                            # back to NCHW


if __name__ == "__main__":
    key = jax.random.PRNGKey(0)
    k_x, k_w, k_g, k_b = jax.random.split(key, 4)

    N, C, H, W = 2, 4, 16, 16            # in_channels = out_channels = 4
    x = jax.random.normal(k_x, (N, C, H, W), dtype=jnp.float32)

    # Conv2d(4, 4, 3, padding=1, bias=False) weight init range.
    fan_in = C * 3 * 3
    bound = 1.0 / np.sqrt(fan_in)
    w = jax.random.uniform(k_w, (C, C, 3, 3), minval=-bound, maxval=bound, dtype=jnp.float32)

    # Non-default BN affine params to exercise the full gamma/beta path
    # (PyTorch default init is gamma=1, beta=0; semantics are identical for any values).
    gamma = 1.0 + 0.1 * jax.random.normal(k_g, (C,), dtype=jnp.float32)
    beta = 0.1 * jax.random.normal(k_b, (C,), dtype=jnp.float32)

    out = jax.block_until_ready(jax.jit(preact_block)(x, w, gamma, beta))

    ref = _reference(x, w, gamma, beta)
    np.testing.assert_allclose(np.asarray(out), np.asarray(ref), rtol=1e-4, atol=1e-4)

    print("KERNEL_OK")
</pallas_src>

<mosaic_0001>
module attributes {stable_mosaic.version = 11 : i64} {
  func.func @_preact_kernel(%arg0: i32, %arg1: memref<16x128xf32, #tpu.memory_space<vmem>>, %arg2: memref<1x128xf32, #tpu.memory_space<vmem>>, %arg3: memref<1x128xf32, #tpu.memory_space<vmem>>, %arg4: memref<45x128xf32, #tpu.memory_space<vmem>>, %arg5: memref<16x128xf32, #tpu.memory_space<vmem>>, %arg6: memref<18x144xf32, #tpu.memory_space<vmem>>) attributes {dimension_semantics = [#tpu.dimension_semantics<arbitrary>], iteration_bounds = array<i64: 1>, scalar_prefetch = 0 : i64, scratch_operands = 1 : i64, tpu.core_type = #tpu.core_type<tc>, window_params = [{pipeline_mode = #tpu.pipeline_mode<synchronous>, transform_indices = @transform_0, window_bounds = array<i64: 16, 128>}, {pipeline_mode = #tpu.pipeline_mode<synchronous>, transform_indices = @transform_1, window_bounds = array<i64: 1, 128>}, {pipeline_mode = #tpu.pipeline_mode<synchronous>, transform_indices = @transform_2, window_bounds = array<i64: 1, 128>}, {pipeline_mode = #tpu.pipeline_mode<synchronous>, transform_indices = @transform_3, window_bounds = array<i64: 45, 128>}, {pipeline_mode = #tpu.pipeline_mode<synchronous>, transform_indices = @transform_4, window_bounds = array<i64: 16, 128>}]} {
    %c0 = arith.constant 0 : index
    %c0_0 = arith.constant 0 : index
    %0 = vector.load %arg1[%c0, %c0_0] : memref<16x128xf32, #tpu.memory_space<vmem>>, vector<16x128xf32>
    %cst = arith.constant dense<0.000000e+00> : vector<128xf32>
    %1 = vector.multi_reduction <add>, %0, %cst [0] : vector<16x128xf32> to vector<128xf32>
    %2 = vector.shape_cast %1 : vector<128xf32> to vector<1x128xf32>
    %c4_i32 = arith.constant 4 : i32
    %3 = tpu.dynamic_rotate %2 by %c4_i32 dim 1 : vector<1x128xf32>, i32 -> vector<1x128xf32>
    %4 = arith.addf %2, %3 : vector<1x128xf32>
    %c8_i32 = arith.constant 8 : i32
    %5 = tpu.dynamic_rotate %4 by %c8_i32 dim 1 : vector<1x128xf32>, i32 -> vector<1x128xf32>
    %6 = arith.addf %4, %5 : vector<1x128xf32>
    %c16_i32 = arith.constant 16 : i32
    %7 = tpu.dynamic_rotate %6 by %c16_i32 dim 1 : vector<1x128xf32>, i32 -> vector<1x128xf32>
    %8 = arith.addf %6, %7 : vector<1x128xf32>
    %c32_i32 = arith.constant 32 : i32
    %9 = tpu.dynamic_rotate %8 by %c32_i32 dim 1 : vector<1x128xf32>, i32 -> vector<1x128xf32>
    %10 = arith.addf %8, %9 : vector<1x128xf32>
    %c64_i32 = arith.constant 64 : i32
    %11 = tpu.dynamic_rotate %10 by %c64_i32 dim 1 : vector<1x128xf32>, i32 -> vector<1x128xf32>
    %12 = arith.addf %10, %11 : vector<1x128xf32>
    %cst_1 = arith.constant 0.001953125 : f32
    %13 = vector.broadcast %cst_1 : f32 to vector<1x128xf32>
    %14 = arith.mulf %12, %13 : vector<1x128xf32>
    %15 = vector.broadcast %14 : vector<1x128xf32> to vector<16x128xf32>
    %16 = arith.subf %0, %15 : vector<16x128xf32>
    %17 = arith.mulf %16, %16 : vector<16x128xf32>
    %cst_2 = arith.constant dense<0.000000e+00> : vector<128xf32>
    %18 = vector.multi_reduction <add>, %17, %cst_2 [0] : vector<16x128xf32> to vector<128xf32>
    %19 = vector.shape_cast %18 : vector<128xf32> to vector<1x128xf32>
    %c4_i32_3 = arith.constant 4 : i32
    %20 = tpu.dynamic_rotate %19 by %c4_i32_3 dim 1 : vector<1x128xf32>, i32 -> vector<1x128xf32>
    %21 = arith.addf %19, %20 : vector<1x128xf32>
    %c8_i32_4 = arith.constant 8 : i32
    %22 = tpu.dynamic_rotate %21 by %c8_i32_4 dim 1 : vector<1x128xf32>, i32 -> vector<1x128xf32>
    %23 = arith.addf %21, %22 : vector<1x128xf32>
    %c16_i32_5 = arith.constant 16 : i32
    %24 = tpu.dynamic_rotate %23 by %c16_i32_5 dim 1 : vector<1x128xf32>, i32 -> vector<1x128xf32>
    %25 = arith.addf %23, %24 : vector<1x128xf32>
    %c32_i32_6 = arith.constant 32 : i32
    %26 = tpu.dynamic_rotate %25 by %c32_i32_6 dim 1 : vector<1x128xf32>, i32 -> vector<1x128xf32>
    %27 = arith.addf %25, %26 : vector<1x128xf32>
    %c64_i32_7 = arith.constant 64 : i32
    %28 = tpu.dynamic_rotate %27 by %c64_i32_7 dim 1 : vector<1x128xf32>, i32 -> vector<1x128xf32>
    %29 = arith.addf %27, %28 : vector<1x128xf32>
    %cst_8 = arith.constant 0.001953125 : f32
    %30 = vector.broadcast %cst_8 : f32 to vector<1x128xf32>
    %31 = arith.mulf %29, %30 : vector<1x128xf32>
    %c0_9 = arith.constant 0 : index
    %c0_10 = arith.constant 0 : index
    %32 = vector.load %arg2[%c0_9, %c0_10] : memref<1x128xf32, #tpu.memory_space<vmem>>, vector<1x128xf32>
    %cst_11 = arith.constant 9.99999974E-6 : f32
    %33 = vector.broadcast %cst_11 : f32 to vector<1x128xf32>
    %34 = arith.addf %31, %33 : vector<1x128xf32>
    %35 = math.rsqrt %34 : vector<1x128xf32>
    %36 = arith.mulf %32, %35 : vector<1x128xf32>
    %c0_12 = arith.constant 0 : index
    %c0_13 = arith.constant 0 : index
    %37 = vector.load %arg3[%c0_12, %c0_13] : memref<1x128xf32, #tpu.memory_space<vmem>>, vector<1x128xf32>
    %38 = arith.mulf %14, %36 : vector<1x128xf32>
    %39 = arith.subf %37, %38 : vector<1x128xf32>
    %40 = vector.broadcast %36 : vector<1x128xf32> to vector<16x128xf32>
    %41 = arith.mulf %0, %40 : vector<16x128xf32>
    %42 = vector.broadcast %39 : vector<1x128xf32> to vector<16x128xf32>
    %43 = arith.addf %41, %42 : vector<16x128xf32>
    %cst_14 = arith.constant 0.000000e+00 : f32
    %44 = vector.broadcast %cst_14 : f32 to vector<16x128xf32>
    %45 = arith.maximumf %43, %44 : vector<16x128xf32>
    %cst_15 = arith.constant 0.000000e+00 : f32
    %46 = vector.broadcast %cst_15 : f32 to vector<1x144xf32>
    %c0_16 = arith.constant 0 : index
    %c0_17 = arith.constant 0 : index
    %47 = vector.load %arg6[%c0_16, %c0_17] : memref<18x144xf32, #tpu.memory_space<vmem>>, vector<1x144xf32>
    tpu.vector_store %arg6[%c0_16, %c0_17], %46 {strides = array<i32>} : memref<18x144xf32, #tpu.memory_space<vmem>>, vector<1x144xf32>,
    %cst_18 = arith.constant 0.000000e+00 : f32
    %48 = vector.broadcast %cst_18 : f32 to vector<1x144xf32>
    %c17 = arith.constant 17 : index
    %c0_19 = arith.constant 0 : index
    %49 = vector.load %arg6[%c17, %c0_19] : memref<18x144xf32, #tpu.memory_space<vmem>>, vector<1x144xf32>
    tpu.vector_store %arg6[%c17, %c0_19], %48 {strides = array<i32>} : memref<18x144xf32, #tpu.memory_space<vmem>>, vector<1x144xf32>,
    %cst_20 = arith.constant 0.000000e+00 : f32
    %50 = vector.broadcast %cst_20 : f32 to vector<18x8xf32>
    %c0_21 = arith.constant 0 : index
    %c0_22 = arith.constant 0 : index
    %51 = vector.load %arg6[%c0_21, %c0_22] : memref<18x144xf32, #tpu.memory_space<vmem>>, vector<18x8xf32>
    tpu.vector_store %arg6[%c0_21, %c0_22], %50 {strides = array<i32>} : memref<18x144xf32, #tpu.memory_space<vmem>>, vector<18x8xf32>,
    %cst_23 = arith.constant 0.000000e+00 : f32
    %52 = vector.broadcast %cst_23 : f32 to vector<18x8xf32>
    %c0_24 = arith.constant 0 : index
    %c136 = arith.constant 136 : index
    %53 = vector.load %arg6[%c0_24, %c136] : memref<18x144xf32, #tpu.memory_space<vmem>>, vector<18x8xf32>
    tpu.vector_store %arg6[%c0_24, %c136], %52 {strides = array<i32>} : memref<18x144xf32, #tpu.memory_space<vmem>>, vector<18x8xf32>,
    %c1 = arith.constant 1 : index
    %c8 = arith.constant 8 : index
    %54 = vector.load %arg6[%c1, %c8] : memref<18x144xf32, #tpu.memory_space<vmem>>, vector<16x128xf32>
    tpu.vector_store %arg6[%c1, %c8], %45 {strides = array<i32>} : memref<18x144xf32, #tpu.memory_space<vmem>>, vector<16x128xf32>,
    %c0_25 = arith.constant 0 : index
    %c1_26 = arith.constant 1 : index
    %55 = vector.load %arg6[%c0_25, %c1_26] : memref<18x144xf32, #tpu.memory_space<vmem>>, vector<18x128xf32>
    %56 = vector.extract_strided_slice %55 {offsets = [0, 0], sizes = [16, 128], strides = [1, 1]} : vector<18x128xf32> to vector<16x128xf32>
    %c0_27 = arith.constant 0 : index
    %c0_28 = arith.constant 0 : index
    %57 = vector.load %arg4[%c0_27, %c0_28] : memref<45x128xf32, #tpu.memory_space<vmem>>, vector<1x128xf32>
    %58 = vector.broadcast %57 : vector<1x128xf32> to vector<16x128xf32>
    %59 = arith.mulf %56, %58 : vector<16x128xf32>
    %60 = arith.addf %0, %59 : vector<16x128xf32>
    %61 = vector.extract_strided_slice %55 {offsets = [1, 0], sizes = [16, 128], strides = [1, 1]} : vector<18x128xf32> to vector<16x128xf32>
    %c1_29 = arith.constant 1 : index
    %c0_30 = arith.constant 0 : index
    %62 = vector.load %arg4[%c1_29, %c0_30] : memref<45x128xf32, #tpu.memory_space<vmem>>, vector<1x128xf32>
    %63 = vector.broadcast %62 : vector<1x128xf32> to vector<16x128xf32>
    %64 = arith.mulf %61, %63 : vector<16x128xf32>
    %65 = arith.addf %60, %64 : vector<16x128xf32>
    %66 = vector.extract_strided_slice %55 {offsets = [2, 0], sizes = [16, 128], strides = [1, 1]} : vector<18x128xf32> to vector<16x128xf32>
    %c2 = arith.constant 2 : index
    %c0_31 = arith.constant 0 : index
    %67 = vector.load %arg4[%c2, %c0_31] : memref<45x128xf32, #tpu.memory_space<vmem>>, vector<1x128xf32>
    %68 = vector.broadcast %67 : vector<1x128xf32> to vector<16x128xf32>
    %69 = arith.mulf %66, %68 : vector<16x128xf32>
    %70 = arith.addf %65, %69 : vector<16x128xf32>
    %c0_32 = arith.constant 0 : index
    %c2_33 = arith.constant 2 : index
    %71 = vector.load %arg6[%c0_32, %c2_33] : memref<18x144xf32, #tpu.memory_space<vmem>>, vector<18x128xf32>
    %72 = vector.extract_strided_slice %71 {offsets = [0, 0], sizes = [16, 128], strides = [1, 1]} : vector<18x128xf32> to vector<16x128xf32>
    %c3 = arith.constant 3 : index
    %c0_34 = arith.constant 0 : index
    %73 = vector.load %arg4[%c3, %c0_34] : memref<45x128xf32, #tpu.memory_space<vmem>>, vector<1x128xf32>
    %74 = vector.broadcast %73 : vector<1x128xf32> to vector<16x128xf32>
    %75 = arith.mulf %72, %74 : vector<16x128xf32>
    %76 = arith.addf %70, %75 : vector<16x128xf32>
    %77 = vector.extract_strided_slice %71 {offsets = [1, 0], sizes = [16, 128], strides = [1, 1]} : vector<18x128xf32> to vector<16x128xf32>
    %c4 = arith.constant 4 : index
    %c0_35 = arith.constant 0 : index
    %78 = vector.load %arg4[%c4, %c0_35] : memref<45x128xf32, #tpu.memory_space<vmem>>, vector<1x128xf32>
    %79 = vector.broadcast %78 : vector<1x128xf32> to vector<16x128xf32>
    %80 = arith.mulf %77, %79 : vector<16x128xf32>
    %81 = arith.addf %76, %80 : vector<16x128xf32>
    %82 = vector.extract_strided_slice %71 {offsets = [2, 0], sizes = [16, 128], strides = [1, 1]} : vector<18x128xf32> to vector<16x128xf32>
    %c5 = arith.constant 5 : index
    %c0_36 = arith.constant 0 : index
    %83 = vector.load %arg4[%c5, %c0_36] : memref<45x128xf32, #tpu.memory_space<vmem>>, vector<1x128xf32>
    %84 = vector.broadcast %83 : vector<1x128xf32> to vector<16x128xf32>
    %85 = arith.mulf %82, %84 : vector<16x128xf32>
    %86 = arith.addf %81, %85 : vector<16x128xf32>
    %c0_37 = arith.constant 0 : index
    %c3_38 = arith.constant 3 : index
    %87 = vector.load %arg6[%c0_37, %c3_38] : memref<18x144xf32, #tpu.memory_space<vmem>>, vector<18x128xf32>
    %88 = vector.extract_strided_slice %87 {offsets = [0, 0], sizes = [16, 128], strides = [1, 1]} : vector<18x128xf32> to vector<16x128xf32>
    %c6 = arith.constant 6 : index
    %c0_39 = arith.constant 0 : index
    %89 = vector.load %arg4[%c6, %c0_39] : memref<45x128xf32, #tpu.memory_space<vmem>>, vector<1x128xf32>
    %90 = vector.broadcast %89 : vector<1x128xf32> to vector<16x128xf32>
    %91 = arith.mulf %88, %90 : vector<16x128xf32>
    %92 = arith.addf %86, %91 : vector<16x128xf32>
    %93 = vector.extract_strided_slice %87 {offsets = [1, 0], sizes = [16, 128], strides = [1, 1]} : vector<18x128xf32> to vector<16x128xf32>
    %c7 = arith.constant 7 : index
    %c0_40 = arith.constant 0 : index
    %94 = vector.load %arg4[%c7, %c0_40] : memref<45x128xf32, #tpu.memory_space<vmem>>, vector<1x128xf32>
    %95 = vector.broadcast %94 : vector<1x128xf32> to vector<16x128xf32>
    %96 = arith.mulf %93, %95 : vector<16x128xf32>
    %97 = arith.addf %92, %96 : vector<16x128xf32>
    %98 = vector.extract_strided_slice %87 {offsets = [2, 0], sizes = [16, 128], strides = [1, 1]} : vector<18x128xf32> to vector<16x128xf32>
    %c8_41 = arith.constant 8 : index
    %c0_42 = arith.constant 0 : index
    %99 = vector.load %arg4[%c8_41, %c0_42] : memref<45x128xf32, #tpu.memory_space<vmem>>, vector<1x128xf32>
    %100 = vector.broadcast %99 : vector<1x128xf32> to vector<16x128xf32>
    %101 = arith.mulf %98, %100 : vector<16x128xf32>
    %102 = arith.addf %97, %101 : vector<16x128xf32>
    %c0_43 = arith.constant 0 : index
    %c4_44 = arith.constant 4 : index
    %103 = vector.load %arg6[%c0_43, %c4_44] : memref<18x144xf32, #tpu.memory_space<vmem>>, vector<18x128xf32>
    %104 = vector.extract_strided_slice %103 {offsets = [0, 0], sizes = [16, 128], strides = [1, 1]} : vector<18x128xf32> to vector<16x128xf32>
    %c9 = arith.constant 9 : index
    %c0_45 = arith.constant 0 : index
    %105 = vector.load %arg4[%c9, %c0_45] : memref<45x128xf32, #tpu.memory_space<vmem>>, vector<1x128xf32>
    %106 = vector.broadcast %105 : vector<1x128xf32> to vector<16x128xf32>
    %107 = arith.mulf %104, %106 : vector<16x128xf32>
    %108 = arith.addf %102, %107 : vector<16x128xf32>
    %109 = vector.extract_strided_slice %103 {offsets = [1, 0], sizes = [16, 128], strides = [1, 1]} : vector<18x128xf32> to vector<16x128xf32>
    %c10 = arith.constant 10 : index
    %c0_46 = arith.constant 0 : index
    %110 = vector.load %arg4[%c10, %c0_46] : memref<45x128xf32, #tpu.memory_space<vmem>>, vector<1x128xf32>
    %111 = vector.broadcast %110 : vector<1x128xf32> to vector<16x128xf32>
    %112 = arith.mulf %109, %111 : vector<16x128xf32>
    %113 = arith.addf %108, %112 : vector<16x128xf32>
    %114 = vector.extract_strided_slice %103 {offsets = [2, 0], sizes = [16, 128], strides = [1, 1]} : vector<18x128xf32> to vector<16x128xf32>
    %c11 = arith.constant 11 : index
    %c0_47 = arith.constant 0 : index
    %115 = vector.load %arg4[%c11, %c0_47] : memref<45x128xf32, #tpu.memory_space<vmem>>, vector<1x128xf32>
    %116 = vector.broadcast %115 : vector<1x128xf32> to vector<16x128xf32>
    %117 = arith.mulf %114, %116 : vector<16x128xf32>
    %118 = arith.addf %113, %117 : vector<16x128xf32>
    %c0_48 = arith.constant 0 : index
    %c5_49 = arith.constant 5 : index
    %119 = vector.load %arg6[%c0_48, %c5_49] : memref<18x144xf32, #tpu.memory_space<vmem>>, vector<18x128xf32>
    %120 = vector.extract_strided_slice %119 {offsets = [0, 0], sizes = [16, 128], strides = [1, 1]} : vector<18x128xf32> to vector<16x128xf32>
    %c12 = arith.constant 12 : index
    %c0_50 = arith.constant 0 : index
    %121 = vector.load %arg4[%c12, %c0_50] : memref<45x128xf32, #tpu.memory_space<vmem>>, vector<1x128xf32>
    %122 = vector.broadcast %121 : vector<1x128xf32> to vector<16x128xf32>
    %123 = arith.mulf %120, %122 : vector<16x128xf32>
    %124 = arith.addf %118, %123 : vector<16x128xf32>
    %125 = vector.extract_strided_slice %119 {offsets = [1, 0], sizes = [16, 128], strides = [1, 1]} : vector<18x128xf32> to vector<16x128xf32>
    %c13 = arith.constant 13 : index
    %c0_51 = arith.constant 0 : index
    %126 = vector.load %arg4[%c13, %c0_51] : memref<45x128xf32, #tpu.memory_space<vmem>>, vector<1x128xf32>
    %127 = vector.broadcast %126 : vector<1x128xf32> to vector<16x128xf32>
    %128 = arith.mulf %125, %127 : vector<16x128xf32>
    %129 = arith.addf %124, %128 : vector<16x128xf32>
    %130 = vector.extract_strided_slice %119 {offsets = [2, 0], sizes = [16, 128], strides = [1, 1]} : vector<18x128xf32> to vector<16x128xf32>
    %c14 = arith.constant 14 : index
    %c0_52 = arith.constant 0 : index
    %131 = vector.load %arg4[%c14, %c0_52] : memref<45x128xf32, #tpu.memory_space<vmem>>, vector<1x128xf32>
    %132 = vector.broadcast %131 : vector<1x128xf32> to vector<16x128xf32>
    %133 = arith.mulf %130, %132 : vector<16x128xf32>
    %134 = arith.addf %129, %133 : vector<16x128xf32>
    %c0_53 = arith.constant 0 : index
    %c6_54 = arith.constant 6 : index
    %135 = vector.load %arg6[%c0_53, %c6_54] : memref<18x144xf32, #tpu.memory_space<vmem>>, vector<18x128xf32>
    %136 = vector.extract_strided_slice %135 {offsets = [0, 0], sizes = [16, 128], strides = [1, 1]} : vector<18x128xf32> to vector<16x128xf32>
    %c15 = arith.constant 15 : index
    %c0_55 = arith.constant 0 : index
    %137 = vector.load %arg4[%c15, %c0_55] : memref<45x128xf32, #tpu.memory_space<vmem>>, vector<1x128xf32>
    %138 = vector.broadcast %137 : vector<1x128xf32> to vector<16x128xf32>
    %139 = arith.mulf %136, %138 : vector<16x128xf32>
    %140 = arith.addf %134, %139 : vector<16x128xf32>
    %141 = vector.extract_strided_slice %135 {offsets = [1, 0], sizes = [16, 128], strides = [1, 1]} : vector<18x128xf32> to vector<16x128xf32>
    %c16 = arith.constant 16 : index
    %c0_56 = arith.constant 0 : index
    %142 = vector.load %arg4[%c16, %c0_56] : memref<45x128xf32, #tpu.memory_space<vmem>>, vector<1x128xf32>
    %143 = vector.broadcast %142 : vector<1x128xf32> to vector<16x128xf32>
    %144 = arith.mulf %141, %143 : vector<16x128xf32>
    %145 = arith.addf %140, %144 : vector<16x128xf32>
    %146 = vector.extract_strided_slice %135 {offsets = [2, 0], sizes = [16, 128], strides = [1, 1]} : vector<18x128xf32> to vector<16x128xf32>
    %c17_57 = arith.constant 17 : index
    %c0_58 = arith.constant 0 : index
    %147 = vector.load %arg4[%c17_57, %c0_58] : memref<45x128xf32, #tpu.memory_space<vmem>>, vector<1x128xf32>
    %148 = vector.broadcast %147 : vector<1x128xf32> to vector<16x128xf32>
    %149 = arith.mulf %146, %148 : vector<16x128xf32>
    %150 = arith.addf %145, %149 : vector<16x128xf32>
    %c0_59 = arith.constant 0 : index
    %c7_60 = arith.constant 7 : index
    %151 = vector.load %arg6[%c0_59, %c7_60] : memref<18x144xf32, #tpu.memory_space<vmem>>, vector<18x128xf32>
    %152 = vector.extract_strided_slice %151 {offsets = [0, 0], sizes = [16, 128], strides = [1, 1]} : vector<18x128xf32> to vector<16x128xf32>
    %c18 = arith.constant 18 : index
    %c0_61 = arith.constant 0 : index
    %153 = vector.load %arg4[%c18, %c0_61] : memref<45x128xf32, #tpu.memory_space<vmem>>, vector<1x128xf32>
    %154 = vector.broadcast %153 : vector<1x128xf32> to vector<16x128xf32>
    %155 = arith.mulf %152, %154 : vector<16x128xf32>
    %156 = arith.addf %150, %155 : vector<16x128xf32>
    %157 = vector.extract_strided_slice %151 {offsets = [1, 0], sizes = [16, 128], strides = [1, 1]} : vector<18x128xf32> to vector<16x128xf32>
    %c19 = arith.constant 19 : index
    %c0_62 = arith.constant 0 : index
    %158 = vector.load %arg4[%c19, %c0_62] : memref<45x128xf32, #tpu.memory_space<vmem>>, vector<1x128xf32>
    %159 = vector.broadcast %158 : vector<1x128xf32> to vector<16x128xf32>
    %160 = arith.mulf %157, %159 : vector<16x128xf32>
    %161 = arith.addf %156, %160 : vector<16x128xf32>
    %162 = vector.extract_strided_slice %151 {offsets = [2, 0], sizes = [16, 128], strides = [1, 1]} : vector<18x128xf32> to vector<16x128xf32>
    %c20 = arith.constant 20 : index
    %c0_63 = arith.constant 0 : index
    %163 = vector.load %arg4[%c20, %c0_63] : memref<45x128xf32, #tpu.memory_space<vmem>>, vector<1x128xf32>
    %164 = vector.broadcast %163 : vector<1x128xf32> to vector<16x128xf32>
    %165 = arith.mulf %162, %164 : vector<16x128xf32>
    %166 = arith.addf %161, %165 : vector<16x128xf32>
    %c0_64 = arith.constant 0 : index
    %c8_65 = arith.constant 8 : index
    %167 = vector.load %arg6[%c0_64, %c8_65] : memref<18x144xf32, #tpu.memory_space<vmem>>, vector<18x128xf32>
    %168 = vector.extract_strided_slice %167 {offsets = [0, 0], sizes = [16, 128], strides = [1, 1]} : vector<18x128xf32> to vector<16x128xf32>
    %c21 = arith.constant 21 : index
    %c0_66 = arith.constant 0 : index
    %169 = vector.load %arg4[%c21, %c0_66] : memref<45x128xf32, #tpu.memory_space<vmem>>, vector<1x128xf32>
    %170 = vector.broadcast %169 : vector<1x128xf32> to vector<16x128xf32>
    %171 = arith.mulf %168, %170 : vector<16x128xf32>
    %172 = arith.addf %166, %171 : vector<16x128xf32>
    %173 = vector.extract_strided_slice %167 {offsets = [1, 0], sizes = [16, 128], strides = [1, 1]} : vector<18x128xf32> to vector<16x128xf32>
    %c22 = arith.constant 22 : index
    %c0_67 = arith.constant 0 : index
    %174 = vector.load %arg4[%c22, %c0_67] : memref<45x128xf32, #tpu.memory_space<vmem>>, vector<1x128xf32>
    %175 = vector.broadcast %174 : vector<1x128xf32> to vector<16x128xf32>
    %176 = arith.mulf %173, %175 : vector<16x128xf32>
    %177 = arith.addf %172, %176 : vector<16x128xf32>
    %178 = vector.extract_strided_slice %167 {offsets = [2, 0], sizes = [16, 128], strides = [1, 1]} : vector<18x128xf32> to vector<16x128xf32>
    %c23 = arith.constant 23 : index
    %c0_68 = arith.constant 0 : index
    %179 = vector.load %arg4[%c23, %c0_68] : memref<45x128xf32, #tpu.memory_space<vmem>>, vector<1x128xf32>
    %180 = vector.broadcast %179 : vector<1x128xf32> to vector<16x128xf32>
    %181 = arith.mulf %178, %180 : vector<16x128xf32>
    %182 = arith.addf %177, %181 : vector<16x128xf32>
    %c0_69 = arith.constant 0 : index
    %c9_70 = arith.constant 9 : index
    %183 = vector.load %arg6[%c0_69, %c9_70] : memref<18x144xf32, #tpu.memory_space<vmem>>, vector<18x128xf32>
    %184 = vector.extract_strided_slice %183 {offsets = [0, 0], sizes = [16, 128], strides = [1, 1]} : vector<18x128xf32> to vector<16x128xf32>
    %c24 = arith.constant 24 : index
    %c0_71 = arith.constant 0 : index
    %185 = vector.load %arg4[%c24, %c0_71] : memref<45x128xf32, #tpu.memory_space<vmem>>, vector<1x128xf32>
    %186 = vector.broadcast %185 : vector<1x128xf32> to vector<16x128xf32>
    %187 = arith.mulf %184, %186 : vector<16x128xf32>
    %188 = arith.addf %182, %187 : vector<16x128xf32>
    %189 = vector.extract_strided_slice %183 {offsets = [1, 0], sizes = [16, 128], strides = [1, 1]} : vector<18x128xf32> to vector<16x128xf32>
    %c25 = arith.constant 25 : index
    %c0_72 = arith.constant 0 : index
    %190 = vector.load %arg4[%c25, %c0_72] : memref<45x128xf32, #tpu.memory_space<vmem>>, vector<1x128xf32>
    %191 = vector.broadcast %190 : vector<1x128xf32> to vector<16x128xf32>
    %192 = arith.mulf %189, %191 : vector<16x128xf32>
    %193 = arith.addf %188, %192 : vector<16x128xf32>
    %194 = vector.extract_strided_slice %183 {offsets = [2, 0], sizes = [16, 128], strides = [1, 1]} : vector<18x128xf32> to vector<16x128xf32>
    %c26 = arith.constant 26 : index
    %c0_73 = arith.constant 0 : index
    %195 = vector.load %arg4[%c26, %c0_73] : memref<45x128xf32, #tpu.memory_space<vmem>>, vector<1x128xf32>
    %196 = vector.broadcast %195 : vector<1x128xf32> to vector<16x128xf32>
    %197 = arith.mulf %194, %196 : vector<16x128xf32>
    %198 = arith.addf %193, %197 : vector<16x128xf32>
    %c0_74 = arith.constant 0 : index
    %c10_75 = arith.constant 10 : index
    %199 = vector.load %arg6[%c0_74, %c10_75] : memref<18x144xf32, #tpu.memory_space<vmem>>, vector<18x128xf32>
    %200 = vector.extract_strided_slice %199 {offsets = [0, 0], sizes = [16, 128], strides = [1, 1]} : vector<18x128xf32> to vector<16x128xf32>
    %c27 = arith.constant 27 : index
    %c0_76 = arith.constant 0 : index
    %201 = vector.load %arg4[%c27, %c0_76] : memref<45x128xf32, #tpu.memory_space<vmem>>, vector<1x128xf32>
    %202 = vector.broadcast %201 : vector<1x128xf32> to vector<16x128xf32>
    %203 = arith.mulf %200, %202 : vector<16x128xf32>
    %204 = arith.addf %198, %203 : vector<16x128xf32>
    %205 = vector.extract_strided_slice %199 {offsets = [1, 0], sizes = [16, 128], strides = [1, 1]} : vector<18x128xf32> to vector<16x128xf32>
    %c28 = arith.constant 28 : index
    %c0_77 = arith.constant 0 : index
    %206 = vector.load %arg4[%c28, %c0_77] : memref<45x128xf32, #tpu.memory_space<vmem>>, vector<1x128xf32>
    %207 = vector.broadcast %206 : vector<1x128xf32> to vector<16x128xf32>
    %208 = arith.mulf %205, %207 : vector<16x128xf32>
    %209 = arith.addf %204, %208 : vector<16x128xf32>
    %210 = vector.extract_strided_slice %199 {offsets = [2, 0], sizes = [16, 128], strides = [1, 1]} : vector<18x128xf32> to vector<16x128xf32>
    %c29 = arith.constant 29 : index
    %c0_78 = arith.constant 0 : index
    %211 = vector.load %arg4[%c29, %c0_78] : memref<45x128xf32, #tpu.memory_space<vmem>>, vector<1x128xf32>
    %212 = vector.broadcast %211 : vector<1x128xf32> to vector<16x128xf32>
    %213 = arith.mulf %210, %212 : vector<16x128xf32>
    %214 = arith.addf %209, %213 : vector<16x128xf32>
    %c0_79 = arith.constant 0 : index
    %c11_80 = arith.constant 11 : index
    %215 = vector.load %arg6[%c0_79, %c11_80] : memref<18x144xf32, #tpu.memory_space<vmem>>, vector<18x128xf32>
    %216 = vector.extract_strided_slice %215 {offsets = [0, 0], sizes = [16, 128], strides = [1, 1]} : vector<18x128xf32> to vector<16x128xf32>
    %c30 = arith.constant 30 : index
    %c0_81 = arith.constant 0 : index
    %217 = vector.load %arg4[%c30, %c0_81] : memref<45x128xf32, #tpu.memory_space<vmem>>, vector<1x128xf32>
    %218 = vector.broadcast %217 : vector<1x128xf32> to vector<16x128xf32>
    %219 = arith.mulf %216, %218 : vector<16x128xf32>
    %220 = arith.addf %214, %219 : vector<16x128xf32>
    %221 = vector.extract_strided_slice %215 {offsets = [1, 0], sizes = [16, 128], strides = [1, 1]} : vector<18x128xf32> to vector<16x128xf32>
    %c31 = arith.constant 31 : index
    %c0_82 = arith.constant 0 : index
    %222 = vector.load %arg4[%c31, %c0_82] : memref<45x128xf32, #tpu.memory_space<vmem>>, vector<1x128xf32>
    %223 = vector.broadcast %222 : vector<1x128xf32> to vector<16x128xf32>
    %224 = arith.mulf %221, %223 : vector<16x128xf32>
    %225 = arith.addf %220, %224 : vector<16x128xf32>
    %226 = vector.extract_strided_slice %215 {offsets = [2, 0], sizes = [16, 128], strides = [1, 1]} : vector<18x128xf32> to vector<16x128xf32>
    %c32 = arith.constant 32 : index
    %c0_83 = arith.constant 0 : index
    %227 = vector.load %arg4[%c32, %c0_83] : memref<45x128xf32, #tpu.memory_space<vmem>>, vector<1x128xf32>
    %228 = vector.broadcast %227 : vector<1x128xf32> to vector<16x128xf32>
    %229 = arith.mulf %226, %228 : vector<16x128xf32>
    %230 = arith.addf %225, %229 : vector<16x128xf32>
    %c0_84 = arith.constant 0 : index
    %c12_85 = arith.constant 12 : index
    %231 = vector.load %arg6[%c0_84, %c12_85] : memref<18x144xf32, #tpu.memory_space<vmem>>, vector<18x128xf32>
    %232 = vector.extract_strided_slice %231 {offsets = [0, 0], sizes = [16, 128], strides = [1, 1]} : vector<18x128xf32> to vector<16x128xf32>
    %c33 = arith.constant 33 : index
    %c0_86 = arith.constant 0 : index
    %233 = vector.load %arg4[%c33, %c0_86] : memref<45x128xf32, #tpu.memory_space<vmem>>, vector<1x128xf32>
    %234 = vector.broadcast %233 : vector<1x128xf32> to vector<16x128xf32>
    %235 = arith.mulf %232, %234 : vector<16x128xf32>
    %236 = arith.addf %230, %235 : vector<16x128xf32>
    %237 = vector.extract_strided_slice %231 {offsets = [1, 0], sizes = [16, 128], strides = [1, 1]} : vector<18x128xf32> to vector<16x128xf32>
    %c34 = arith.constant 34 : index
    %c0_87 = arith.constant 0 : index
    %238 = vector.load %arg4[%c34, %c0_87] : memref<45x128xf32, #tpu.memory_space<vmem>>, vector<1x128xf32>
    %239 = vector.broadcast %238 : vector<1x128xf32> to vector<16x128xf32>
    %240 = arith.mulf %237, %239 : vector<16x128xf32>
    %241 = arith.addf %236, %240 : vector<16x128xf32>
    %242 = vector.extract_strided_slice %231 {offsets = [2, 0], sizes = [16, 128], strides = [1, 1]} : vector<18x128xf32> to vector<16x128xf32>
    %c35 = arith.constant 35 : index
    %c0_88 = arith.constant 0 : index
    %243 = vector.load %arg4[%c35, %c0_88] : memref<45x128xf32, #tpu.memory_space<vmem>>, vector<1x128xf32>
    %244 = vector.broadcast %243 : vector<1x128xf32> to vector<16x128xf32>
    %245 = arith.mulf %242, %244 : vector<16x128xf32>
    %246 = arith.addf %241, %245 : vector<16x128xf32>
    %c0_89 = arith.constant 0 : index
    %c13_90 = arith.constant 13 : index
    %247 = vector.load %arg6[%c0_89, %c13_90] : memref<18x144xf32, #tpu.memory_space<vmem>>, vector<18x128xf32>
    %248 = vector.extract_strided_slice %247 {offsets = [0, 0], sizes = [16, 128], strides = [1, 1]} : vector<18x128xf32> to vector<16x128xf32>
    %c36 = arith.constant 36 : index
    %c0_91 = arith.constant 0 : index
    %249 = vector.load %arg4[%c36, %c0_91] : memref<45x128xf32, #tpu.memory_space<vmem>>, vector<1x128xf32>
    %250 = vector.broadcast %249 : vector<1x128xf32> to vector<16x128xf32>
    %251 = arith.mulf %248, %250 : vector<16x128xf32>
    %252 = arith.addf %246, %251 : vector<16x128xf32>
    %253 = vector.extract_strided_slice %247 {offsets = [1, 0], sizes = [16, 128], strides = [1, 1]} : vector<18x128xf32> to vector<16x128xf32>
    %c37 = arith.constant 37 : index
    %c0_92 = arith.constant 0 : index
    %254 = vector.load %arg4[%c37, %c0_92] : memref<45x128xf32, #tpu.memory_space<vmem>>, vector<1x128xf32>
    %255 = vector.broadcast %254 : vector<1x128xf32> to vector<16x128xf32>
    %256 = arith.mulf %253, %255 : vector<16x128xf32>
    %257 = arith.addf %252, %256 : vector<16x128xf32>
    %258 = vector.extract_strided_slice %247 {offsets = [2, 0], sizes = [16, 128], strides = [1, 1]} : vector<18x128xf32> to vector<16x128xf32>
    %c38 = arith.constant 38 : index
    %c0_93 = arith.constant 0 : index
    %259 = vector.load %arg4[%c38, %c0_93] : memref<45x128xf32, #tpu.memory_space<vmem>>, vector<1x128xf32>
    %260 = vector.broadcast %259 : vector<1x128xf32> to vector<16x128xf32>
    %261 = arith.mulf %258, %260 : vector<16x128xf32>
    %262 = arith.addf %257, %261 : vector<16x128xf32>
    %c0_94 = arith.constant 0 : index
    %c14_95 = arith.constant 14 : index
    %263 = vector.load %arg6[%c0_94, %c14_95] : memref<18x144xf32, #tpu.memory_space<vmem>>, vector<18x128xf32>
    %264 = vector.extract_strided_slice %263 {offsets = [0, 0], sizes = [16, 128], strides = [1, 1]} : vector<18x128xf32> to vector<16x128xf32>
    %c39 = arith.constant 39 : index
    %c0_96 = arith.constant 0 : index
    %265 = vector.load %arg4[%c39, %c0_96] : memref<45x128xf32, #tpu.memory_space<vmem>>, vector<1x128xf32>
    %266 = vector.broadcast %265 : vector<1x128xf32> to vector<16x128xf32>
    %267 = arith.mulf %264, %266 : vector<16x128xf32>
    %268 = arith.addf %262, %267 : vector<16x128xf32>
    %269 = vector.extract_strided_slice %263 {offsets = [1, 0], sizes = [16, 128], strides = [1, 1]} : vector<18x128xf32> to vector<16x128xf32>
    %c40 = arith.constant 40 : index
    %c0_97 = arith.constant 0 : index
    %270 = vector.load %arg4[%c40, %c0_97] : memref<45x128xf32, #tpu.memory_space<vmem>>, vector<1x128xf32>
    %271 = vector.broadcast %270 : vector<1x128xf32> to vector<16x128xf32>
    %272 = arith.mulf %269, %271 : vector<16x128xf32>
    %273 = arith.addf %268, %272 : vector<16x128xf32>
    %274 = vector.extract_strided_slice %263 {offsets = [2, 0], sizes = [16, 128], strides = [1, 1]} : vector<18x128xf32> to vector<16x128xf32>
    %c41 = arith.constant 41 : index
    %c0_98 = arith.constant 0 : index
    %275 = vector.load %arg4[%c41, %c0_98] : memref<45x128xf32, #tpu.memory_space<vmem>>, vector<1x128xf32>
    %276 = vector.broadcast %275 : vector<1x128xf32> to vector<16x128xf32>
    %277 = arith.mulf %274, %276 : vector<16x128xf32>
    %278 = arith.addf %273, %277 : vector<16x128xf32>
    %c0_99 = arith.constant 0 : index
    %c15_100 = arith.constant 15 : index
    %279 = vector.load %arg6[%c0_99, %c15_100] : memref<18x144xf32, #tpu.memory_space<vmem>>, vector<18x128xf32>
    %280 = vector.extract_strided_slice %279 {offsets = [0, 0], sizes = [16, 128], strides = [1, 1]} : vector<18x128xf32> to vector<16x128xf32>
    %c42 = arith.constant 42 : index
    %c0_101 = arith.constant 0 : index
    %281 = vector.load %arg4[%c42, %c0_101] : memref<45x128xf32, #tpu.memory_space<vmem>>, vector<1x128xf32>
    %282 = vector.broadcast %281 : vector<1x128xf32> to vector<16x128xf32>
    %283 = arith.mulf %280, %282 : vector<16x128xf32>
    %284 = arith.addf %278, %283 : vector<16x128xf32>
    %285 = vector.extract_strided_slice %279 {offsets = [1, 0], sizes = [16, 128], strides = [1, 1]} : vector<18x128xf32> to vector<16x128xf32>
    %c43 = arith.constant 43 : index
    %c0_102 = arith.constant 0 : index
    %286 = vector.load %arg4[%c43, %c0_102] : memref<45x128xf32, #tpu.memory_space<vmem>>, vector<1x128xf32>
    %287 = vector.broadcast %286 : vector<1x128xf32> to vector<16x128xf32>
    %288 = arith.mulf %285, %287 : vector<16x128xf32>
    %289 = arith.addf %284, %288 : vector<16x128xf32>
    %290 = vector.extract_strided_slice %279 {offsets = [2, 0], sizes = [16, 128], strides = [1, 1]} : vector<18x128xf32> to vector<16x128xf32>
    %c44 = arith.constant 44 : index
    %c0_103 = arith.constant 0 : index
    %291 = vector.load %arg4[%c44, %c0_103] : memref<45x128xf32, #tpu.memory_space<vmem>>, vector<1x128xf32>
    %292 = vector.broadcast %291 : vector<1x128xf32> to vector<16x128xf32>
    %293 = arith.mulf %290, %292 : vector<16x128xf32>
    %294 = arith.addf %289, %293 : vector<16x128xf32>
    %c0_104 = arith.constant 0 : index
    %c0_105 = arith.constant 0 : index
    %295 = vector.load %arg5[%c0_104, %c0_105] : memref<16x128xf32, #tpu.memory_space<vmem>>, vector<16x128xf32>
    tpu.vector_store %arg5[%c0_104, %c0_105], %294 {strides = array<i32>} : memref<16x128xf32, #tpu.memory_space<vmem>>, vector<16x128xf32>,
    return
  }
  func.func @transform_0(%arg0: i32) -> (i32, i32) {
    %c0_i32 = arith.constant 0 : i32
    %c0_i32_0 = arith.constant 0 : i32
    %c0_i32_1 = arith.constant 0 : i32
    return %c0_i32, %c0_i32_0 : i32, i32
  }
  func.func @transform_1(%arg0: i32) -> (i32, i32) {
    %c0_i32 = arith.constant 0 : i32
    %c0_i32_0 = arith.constant 0 : i32
    %c0_i32_1 = arith.constant 0 : i32
    return %c0_i32, %c0_i32_0 : i32, i32
  }
  func.func @transform_2(%arg0: i32) -> (i32, i32) {
    %c0_i32 = arith.constant 0 : i32
    %c0_i32_0 = arith.constant 0 : i32
    %c0_i32_1 = arith.constant 0 : i32
    return %c0_i32, %c0_i32_0 : i32, i32
  }
  func.func @transform_3(%arg0: i32) -> (i32, i32) {
    %c0_i32 = arith.constant 0 : i32
    %c0_i32_0 = arith.constant 0 : i32
    %c0_i32_1 = arith.constant 0 : i32
    return %c0_i32, %c0_i32_0 : i32, i32
  }
  func.func @transform_4(%arg0: i32) -> (i32, i32) {
    %c0_i32 = arith.constant 0 : i32
    %c0_i32_0 = arith.constant 0 : i32
    %c0_i32_1 = arith.constant 0 : i32
    return %c0_i32, %c0_i32_0 : i32, i32
  }
}

</mosaic_0001>

<llo_original>
// kernel: tile.13
$region0: #{tile.13}
  #allocation2 [shape = 's32[1]{0}', space=sflag, size = 0x4, scoped, tag = 'scoped memory for tile.13']
  %s0 = inlined_call_operand.hbm [shape: f32[4], index: 0, kind: input, shape index: {}]
  %s1 = inlined_call_operand.vmem [shape: f32[32,4], index: 1, kind: output, shape index: {}]
  $region1: #{tile.13} parent=0
    #allocation0 [shape = 'u8[512]{0}', space=vmem, size = 0x400, scoped, tag = 'operand span for operand 0']
    #allocation1 [shape = 's32[1]{0}', space=sflag, size = 0x4, scoped, tag = 'scoped memory for tile.13']
    %2 = vsyncpa [#allocation1], 0
    // Predicated region
    $region2: #{tile.13} parent=1 // pred_check
      _
    $region3: #{tile.13} parent=1 // pred_check_branch
      %4 = sbr.rel (0) target = $region5
    $region4: #{tile.13} parent=1 // pred_region
      %s6 = ssub.s32 16, 16
      %7 = vsyncadd [#allocation1], %s6
      %s9 = sshll.u32 [#allocation0], 4
      %s10 = int_to_ptr.vmem [resolvable:$true] %s9
      %12 = dma.hbm_to_vmem [thread:$0]  %s0, 16, %s10, [#allocation1]
    $region5: #{tile.13} parent=1 // pred_fallthru
      _
    // Predicated region
    $region6: #{tile.13} parent=1 // pred_check
      _
    $region7: #{tile.13} parent=1 // pred_check_branch
      %14 = sbr.rel (0) target = $region9
    $region8: #{tile.13} parent=1 // pred_region
      %15 = dma.done [#allocation1], 16
    $region9: #{tile.13} parent=1 // pred_fallthru
      _
    %v16 = vld [vmem:[#allocation0] ss:$0 sm:$0xff]
    %17 = vst [vmem:[%s1] sm:$0xff] %v16
    %s18 = scalar_lea.vmem %s1, 8
    %19 = vst [vmem:[%s18] sm:$0xff] %v16
    %s20 = scalar_lea.vmem %s1, 16
    %21 = vst [vmem:[%s20] sm:$0xff] %v16
    %s22 = scalar_lea.vmem %s1, 24
    %23 = vst [vmem:[%s22] sm:$0xff] %v16
    %24 = vsyncpa [#allocation1], 1

// kernel: tile.14
$region0: #{tile.14}
  %s0 = inlined_call_operand.vmem [shape: f32[32,4], index: 0, kind: input, shape index: {}]
  %s1 = inlined_call_operand.vmem [shape: f32[1,128], index: 1, kind: output, shape index: {}]
  $region1: #{tile.14} parent=0
    #allocation0 [shape = 'u8[4096]{0}', space=vmem, size = 0x1000, scoped, tag = 'scoped mem for output reshape']
    %v2 = vld [vmem:[%s0] sm:$0x1]
    %vm3 = vcmask 31744
    %4 = vst.msk [vmem:[#allocation0] sm:$0x1] %vm3, %v2
    %s5 = scalar_lea.vmem %s0, 31
    %v6 = vld [vmem:[%s5] sm:$0x1]
    %7 = vrot.lane.b32.xlu0 %v6, 124
    %v8 = vpop.permute.xlu0 %7
    %vm9 = vcmask 1048544
    %10 = vst.msk [vmem:[#allocation0] sm:$0x1] %vm9, %v8
    %s11 = scalar_lea.vmem %s0, 30
    %v12 = vld [vmem:[%s11] sm:$0x1]
    %13 = vrot.lane.b32.xlu0 %v12, 120
    %v14 = vpop.permute.xlu0 %13
    %vm15 = vcmask 1015744
    %16 = vst.msk [vmem:[#allocation0] sm:$0x1] %vm15, %v14
    %s17 = scalar_lea.vmem %s0, 29
    %v18 = vld [vmem:[%s17] sm:$0x1]
    %19 = vrot.lane.b32.xlu0 %v18, 116
    %v20 = vpop.permute.xlu0 %19
    %vm21 = vcmask 982944
    %22 = vst.msk [vmem:[#allocation0] sm:$0x1] %vm21, %v20
    %s23 = scalar_lea.vmem %s0, 28
    %v24 = vld [vmem:[%s23] sm:$0x1]
    %25 = vrot.lane.b32.xlu0 %v24, 112
    %v26 = vpop.permute.xlu0 %25
    %vm27 = vcmask 950144
    %28 = vst.msk [vmem:[#allocation0] sm:$0x1] %vm27, %v26
    %s29 = scalar_lea.vmem %s0, 27
    %v30 = vld [vmem:[%s29] sm:$0x1]
    %31 = vrot.lane.b32.xlu0 %v30, 108
    %v32 = vpop.permute.xlu0 %31
    %vm33 = vcmask 917344
    %34 = vst.msk [vmem:[#allocation0] sm:$0x1] %vm33, %v32
    %s35 = scalar_lea.vmem %s0, 26
    %v36 = vld [vmem:[%s35] sm:$0x1]
    %37 = vrot.lane.b32.xlu0 %v36, 104
    %v38 = vpop.permute.xlu0 %37
    %vm39 = vcmask 884544
    %40 = vst.msk [vmem:[#allocation0] sm:$0x1] %vm39, %v38
    %s41 = scalar_lea.vmem %s0, 25
    %v42 = vld [vmem:[%s41] sm:$0x1]
    %43 = vrot.lane.b32.xlu0 %v42, 100
    %v44 = vpop.permute.xlu0 %43
    %vm45 = vcmask 851744
    %46 = vst.msk [vmem:[#allocation0] sm:$0x1] %vm45, %v44
    %s47 = scalar_lea.vmem %s0, 24
    %v48 = vld [vmem:[%s47] sm:$0x1]
    %49 = vrot.lane.b32.xlu0 %v48, 96
    %v50 = vpop.permute.xlu0 %49
    %vm51 = vcmask 818944
    %52 = vst.msk [vmem:[#allocation0] sm:$0x1] %vm51, %v50
    %s53 = scalar_lea.vmem %s0, 23
    %v54 = vld [vmem:[%s53] sm:$0x1]
    %55 = vrot.lane.b32.xlu0 %v54, 92
    %v56 = vpop.permute.xlu0 %55
    %vm57 = vcmask 786144
    %58 = vst.msk [vmem:[#allocation0] sm:$0x1] %vm57, %v56
    %s59 = scalar_lea.vmem %s0, 22
    %v60 = vld [vmem:[%s59] sm:$0x1]
    %61 = vrot.lane.b32.xlu0 %v60, 88
    %v62 = vpop.permute.xlu0 %61
    %vm63 = vcmask 753344
    %64 = vst.msk [vmem:[#allocation0] sm:$0x1] %vm63, %v62
    %s65 = scalar_lea.vmem %s0, 21
    %v66 = vld [vmem:[%s65] sm:$0x1]
    %67 = vrot.lane.b32.xlu0 %v66, 84
    %v68 = vpop.permute.xlu0 %67
    %vm69 = vcmask 720544
    %70 = vst.msk [vmem:[#allocation0] sm:$0x1] %vm69, %v68
    %s71 = scalar_lea.vmem %s0, 20
    %v72 = vld [vmem:[%s71] sm:$0x1]
    %73 = vrot.lane.b32.xlu0 %v72, 80
    %v74 = vpop.permute.xlu0 %73
    %vm75 = vcmask 687744
    %76 = vst.msk [vmem:[#allocation0] sm:$0x1] %vm75, %v74
    %s77 = scalar_lea.vmem %s0, 19
    %v78 = vld [vmem:[%s77] sm:$0x1]
    %79 = vrot.lane.b32.xlu0 %v78, 76
    %v80 = vpop.permute.xlu0 %79
    %vm81 = vcmask 654944
    %82 = vst.msk [vmem:[#allocation0] sm:$0x1] %vm81, %v80
    %s83 = scalar_lea.vmem %s0, 18
    %v84 = vld [vmem:[%s83] sm:$0x1]
    %85 = vrot.lane.b32.xlu0 %v84, 72
    %v86 = vpop.permute.xlu0 %85
    %vm87 = vcmask 622144
    %88 = vst.msk [vmem:[#allocation0] sm:$0x1] %vm87, %v86
    %s89 = scalar_lea.vmem %s0, 17
    %v90 = vld [vmem:[%s89] sm:$0x1]
    %91 = vrot.lane.b32.xlu0 %v90, 68
    %v92 = vpop.permute.xlu0 %91
    %vm93 = vcmask 589344
    %94 = vst.msk [vmem:[#allocation0] sm:$0x1] %vm93, %v92
    %s95 = scalar_lea.vmem %s0, 16
    %v96 = vld [vmem:[%s95] sm:$0x1]
    %97 = vrot.lane.b32.xlu0 %v96, 64
    %v98 = vpop.permute.xlu0 %97
    %vm99 = vcmask 556544
    %100 = vst.msk [vmem:[#allocation0] sm:$0x1] %vm99, %v98
    %s101 = scalar_lea.vmem %s0, 15
    %v102 = vld [vmem:[%s101] sm:$0x1]
    %103 = vrot.lane.b32.xlu0 %v102, 60
    %v104 = vpop.permute.xlu0 %103
    %vm105 = vcmask 523744
    %106 = vst.msk [vmem:[#allocation0] sm:$0x1] %vm105, %v104
    %s107 = scalar_lea.vmem %s0, 14
    %v108 = vld [vmem:[%s107] sm:$0x1]
    %109 = vrot.lane.b32.xlu0 %v108, 56
    %v110 = vpop.permute.xlu0 %109
    %vm111 = vcmask 490944
    %112 = vst.msk [vmem:[#allocation0] sm:$0x1] %vm111, %v110
    %s113 = scalar_lea.vmem %s0, 13
    %v114 = vld [vmem:[%s113] sm:$0x1]
    %115 = vrot.lane.b32.xlu0 %v114, 52
    %v116 = vpop.permute.xlu0 %115
    %vm117 = vcmask 458144
    %118 = vst.msk [vmem:[#allocation0] sm:$0x1] %vm117, %v116
    %s119 = scalar_lea.vmem %s0, 12
    %v120 = vld [vmem:[%s119] sm:$0x1]
    %121 = vrot.lane.b32.xlu0 %v120, 48
    %v122 = vpop.permute.xlu0 %121
    %vm123 = vcmask 425344
    %124 = vst.msk [vmem:[#allocation0] sm:$0x1] %vm123, %v122
    %s125 = scalar_lea.vmem %s0, 11
    %v126 = vld [vmem:[%s125] sm:$0x1]
    %127 = vrot.lane.b32.xlu0 %v126, 44
    %v128 = vpop.permute.xlu0 %127
    %vm129 = vcmask 392544
    %130 = vst.msk [vmem:[#allocation0] sm:$0x1] %vm129, %v128
    %s131 = scalar_lea.vmem %s0, 10
    %v132 = vld [vmem:[%s131] sm:$0x1]
    %133 = vrot.lane.b32.xlu0 %v132, 40
    %v134 = vpop.permute.xlu0 %133
    %vm135 = vcmask 359744
    %136 = vst.msk [vmem:[#allocation0] sm:$0x1] %vm135, %v134
    %s137 = scalar_lea.vmem %s0, 9
    %v138 = vld [vmem:[%s137] sm:$0x1]
    %139 = vrot.lane.b32.xlu0 %v138, 36
    %v140 = vpop.permute.xlu0 %139
    %vm141 = vcmask 326944
    %142 = vst.msk [vmem:[#allocation0] sm:$0x1] %vm141, %v140
    %s143 = scalar_lea.vmem %s0, 8
    %v144 = vld [vmem:[%s143] sm:$0x1]
    %145 = vrot.lane.b32.xlu0 %v144, 32
    %v146 = vpop.permute.xlu0 %145
    %vm147 = vcmask 294144
    %148 = vst.msk [vmem:[#allocation0] sm:$0x1] %vm147, %v146
    %s149 = scalar_lea.vmem %s0, 7
    %v150 = vld [vmem:[%s149] sm:$0x1]
    %151 = vrot.lane.b32.xlu0 %v150, 28
    %v152 = vpop.permute.xlu0 %151
    %vm153 = vcmask 261344
    %154 = vst.msk [vmem:[#allocation0] sm:$0x1] %vm153, %v152
    %s155 = scalar_lea.vmem %s0, 6
    %v156 = vld [vmem:[%s155] sm:$0x1]
    %157 = vrot.lane.b32.xlu0 %v156, 24
    %v158 = vpop.permute.xlu0 %157
    %vm159 = vcmask 228544
    %160 = vst.msk [vmem:[#allocation0] sm:$0x1] %vm159, %v158
    %s161 = scalar_lea.vmem %s0, 5
    %v162 = vld [vmem:[%s161] sm:$0x1]
    %163 = vrot.lane.b32.xlu0 %v162, 20
    %v164 = vpop.permute.xlu0 %163
    %vm165 = vcmask 195744
    %166 = vst.msk [vmem:[#allocation0] sm:$0x1] %vm165, %v164
    %s167 = scalar_lea.vmem %s0, 4
    %v168 = vld [vmem:[%s167] sm:$0x1]
    %169 = vrot.lane.b32.xlu0 %v168, 16
    %v170 = vpop.permute.xlu0 %169
    %vm171 = vcmask 162944
    %172 = vst.msk [vmem:[#allocation0] sm:$0x1] %vm171, %v170
    %s173 = scalar_lea.vmem %s0, 3
    %v174 = vld [vmem:[%s173] sm:$0x1]
    %175 = vrot.lane.b32.xlu0 %v174, 12
    %v176 = vpop.permute.xlu0 %175
    %vm177 = vcmask 130144
    %178 = vst.msk [vmem:[#allocation0] sm:$0x1] %vm177, %v176
    %s179 = scalar_lea.vmem %s0, 2
    %v180 = vld [vmem:[%s179] sm:$0x1]
    %181 = vrot.lane.b32.xlu0 %v180, 8
    %v182 = vpop.permute.xlu0 %181
    %vm183 = vcmask 97344
    %184 = vst.msk [vmem:[#allocation0] sm:$0x1] %vm183, %v182
    %s185 = scalar_lea.vmem %s0, 1
    %v186 = vld [vmem:[%s185] sm:$0x1]
    %187 = vrot.lane.b32.xlu0 %v186, 4
    %v188 = vpop.permute.xlu0 %187
    %vm189 = vcmask 64544
    %190 = vst.msk [vmem:[#allocation0] sm:$0x1] %vm189, %v188
    %s192 = sshllo.u32 0, 1
    %v194 = vld [vmem:[#allocation0] sm:%s192]
    %s195 = sshllo.u32 0, 1
    %196 = vst [vmem:[%s1] sm:%s195] %v194

// kernel: preact_block.1
$region0: #{preact_block.1}
  #allocation0 [shape = 'u32[]', space=smem, size = 0x4, offset = 0x4, fixed_abs, tag = 'smem constant byte address 0x4 - core index']
  #allocation1 [shape = 'u32[144,128]{1,0:T(1,128)}', space=vmem, size = 0x12000, scoped, tag = 'internal scratch']
  #allocation2 [shape = 'f32[18,144]{1,0:T(8,128)}', space=vmem, size = 0x6000, scoped, tag = 'scratch operand']
  %s0 = inlined_call_operand.vmem [shape: f32[16,128], index: 0, kind: input, shape index: {}]
  %s1 = inlined_call_operand.vmem [shape: f32[1,128], index: 1, kind: input, shape index: {}]
  %s2 = inlined_call_operand.vmem [shape: f32[1,128], index: 2, kind: input, shape index: {}]
  %s3 = inlined_call_operand.vmem [shape: f32[45,128], index: 3, kind: input, shape index: {}]
  %s4 = inlined_call_operand.vmem [shape: f32[16,128], index: 4, kind: output, shape index: {}]
  %s5 = sld [smem:[#allocation0]]
  $region26: #{preact_block.1} parent=0
    _
  %s7 = ssub.s32 1, %s5
  %s8 = scalar_select 0, %s7, %s5
  // Predicated region
  $region2: #{preact_block.1} parent=0 // pred_check
    _
  $region3: #{preact_block.1} parent=0 // pred_check_branch
    %10 = sbr.rel (0) target = $region5
  $region4: #{preact_block.1} parent=0 // pred_region
    _
  $region5: #{preact_block.1} parent=0 // pred_fallthru
    _
  // Predicated region
  $region6: #{preact_block.1} parent=0 // pred_check
    _
  $region7: #{preact_block.1} parent=0 // pred_check_branch
    %12 = sbr.rel (0) target = $region9
  $region8: #{preact_block.1} parent=0 // pred_region
    _
  $region9: #{preact_block.1} parent=0 // pred_fallthru
    _
  // Predicated region
  $region10: #{preact_block.1} parent=0 // pred_check
    _
  $region11: #{preact_block.1} parent=0 // pred_check_branch
    %14 = sbr.rel (0) target = $region13
  $region12: #{preact_block.1} parent=0 // pred_region
    _
  $region13: #{preact_block.1} parent=0 // pred_fallthru
    _
  // Predicated region
  $region14: #{preact_block.1} parent=0 // pred_check
    _
  $region15: #{preact_block.1} parent=0 // pred_check_branch
    %16 = sbr.rel (0) target = $region17
  $region16: #{preact_block.1} parent=0 // pred_region
    _
  $region17: #{preact_block.1} parent=0 // pred_fallthru
    _
  %v17 = vld [vmem:[%s0] sm:$0xff]
  %v18 = vld [vmem:[%s0 + $0x8] sm:$0xff]
  %v19 = vadd.f32 %v17, %v18
  %v20 = vrot.slane %v19, 4
  %v21 = vadd.f32 %v19, %v20
  %v22 = vrot.slane %v21, 2
  %v23 = vadd.f32 %v21, %v22
  %v24 = vrot.slane %v23, 1
  %v25 = vadd.f32 %v23, %v24
  %26 = vrot.lane.b32.xlu0 %v25, 4
  %v27 = vpop.permute.xlu0 %26
  %v28 = vadd.f32 %v25, %v27
  %29 = vrot.lane.b32.xlu0 %v28, 8
  %v30 = vpop.permute.xlu0 %29
  %v31 = vadd.f32 %v28, %v30
  %32 = vrot.lane.b32.xlu0 %v31, 16
  %v33 = vpop.permute.xlu0 %32
  %v34 = vadd.f32 %v31, %v33
  %35 = vrot.lane.b32.xlu0 %v34, 32
  %v36 = vpop.permute.xlu0 %35
  %v37 = vadd.f32 %v34, %v36
  %38 = vrot.lane.b32.xlu0 %v37, 64
  %v39 = vpop.permute.xlu0 %38
  %v40 = vadd.f32 %v37, %v39
  %v41 = vmul.f32 %v40, 0.001953125
  %v42 = vlaneseq
  %v43 = vshrl.u32 %v42, 7
  %v44 = vsub.s32 0, %v43
  %v45 = vrot.slane %v41, %v44
  %v46 = vsub.f32 %v17, %v45
  %v47 = vsub.f32 %v18, %v45
  %v48 = vmul.f32 %v46, %v46
  %v49 = vmul.f32 %v47, %v47
  %v50 = vadd.f32 %v48, %v49
  %v51 = vrot.slane %v50, 4
  %v52 = vadd.f32 %v50, %v51
  %v53 = vrot.slane %v52, 2
  %v54 = vadd.f32 %v52, %v53
  %v55 = vrot.slane %v54, 1
  %v56 = vadd.f32 %v54, %v55
  %57 = vrot.lane.b32.xlu0 %v56, 4
  %v58 = vpop.permute.xlu0 %57
  %v59 = vadd.f32 %v56, %v58
  %60 = vrot.lane.b32.xlu0 %v59, 8
  %v61 = vpop.permute.xlu0 %60
  %v62 = vadd.f32 %v59, %v61
  %63 = vrot.lane.b32.xlu0 %v62, 16
  %v64 = vpop.permute.xlu0 %63
  %v65 = vadd.f32 %v62, %v64
  %66 = vrot.lane.b32.xlu0 %v65, 32
  %v67 = vpop.permute.xlu0 %66
  %v68 = vadd.f32 %v65, %v67
  %69 = vrot.lane.b32.xlu0 %v68, 64
  %v70 = vpop.permute.xlu0 %69
  %v71 = vadd.f32 %v68, %v70
  %v72 = vmul.f32 %v71, 0.001953125
  %v73 = vld [vmem:[%s1] sm:$0x1]
  %v74 = vadd.f32 %v72, 1e-05
  %v75 = vrsqrt.pop %v74
  %v76 = vmul.f32 %v73, %v75
  %v77 = vld [vmem:[%s2] sm:$0x1]
  %v78 = vmul.f32 %v41, %v76
  %v79 = vsub.f32 %v77, %v78
  %v81 = vlaneseq
  %v82 = vshrl.u32 %v81, 7
  %v83 = vsub.s32 0, %v82
  %v84 = vrot.slane %v76, %v83
  %v86 = vmul.f32 %v17, %v84
  %v87 = vmul.f32 %v18, %v84
  %v89 = vlaneseq
  %v90 = vshrl.u32 %v89, 7
  %v91 = vsub.s32 0, %v90
  %v92 = vrot.slane %v79, %v91
  %v94 = vadd.f32 %v86, %v92
  %v95 = vadd.f32 %v87, %v92
  %v96 = vmax.f32 %v94, 0.0
  %v97 = vmax.f32 %v95, 0.0
  %v98 = vlaneseq
  %vm99 = vcmp.ge.s32.totalorder %v98, 0
  %vm100 = vcmp.lt.s32.totalorder %v98, 144
  %vm101 = vmand %vm99, %vm100
  %102 = vst.msk [vmem:[#allocation2] ss:$8 sm:$0x3] %vm101, 0.0
  %103 = vst.msk [vmem:[#allocation2] ss:$8 sm:$0x0] %vm101, 0.0
  %s104 = scalar_lea.vmem [#allocation2], 33
  %105 = vst.msk [vmem:[%s104] ss:$8 sm:$0x3] %vm101, 0.0
  %106 = vst.msk [vmem:[%s104] ss:$8 sm:$0x0] %vm101, 0.0
  %vm107 = vcmask 64512
  %108 = vst.msk [vmem:[#allocation2] sm:$0xff] %vm107, 0.0
  %109 = vst.msk [vmem:[#allocation2 + $0x10] sm:$0xff] %vm107, 0.0
  %vm110 = vcmask 58368
  %111 = vst.msk [vmem:[#allocation2 + $0x20] sm:$0x3] %vm110, 0.0
  %vm112 = vcmask 130112
  %113 = vst.msk [vmem:[#allocation2 + $0x8] sm:$0xff] %vm112, 0.0
  %114 = vst.msk [vmem:[#allocation2 + $0x18] sm:$0xff] %vm112, 0.0
  %vm115 = vcmask 123968
  %116 = vst.msk [vmem:[#allocation2 + $0x28] sm:$0x3] %vm115, 0.0
  %vm119 = vcmask 1040384
  %v120 = vrot.slane %v96, 7
  %v121 = vrot.slane %v97, 7
  %v122 = vsel %vm119, %v120, %v121
  %123 = vrot.lane.b32.xlu0 %v120, 8
  %v124 = vpop.permute.xlu0 %123
  %125 = vrot.lane.b32.xlu0 %v122, 8
  %v126 = vpop.permute.xlu0 %125
  %127 = vrot.lane.b32.xlu0 %v121, 8
  %v128 = vpop.permute.xlu0 %127
  %vm132 = vcmask 1047617
  %133 = vst.msk [vmem:[#allocation2] sm:$0xfe] %vm132, %v124
  %vm134 = vcmask 64513
  %135 = vst.msk [vmem:[#allocation2 + $0x8] sm:$0xfe] %vm134, %v124
  %vm136 = vcmask 1047616
  %137 = vst.msk [vmem:[#allocation2 + $0x10] sm:$0xff] %vm136, %v126
  %138 = vst.msk [vmem:[#allocation2 + $0x18] sm:$0xff] %vm107, %v126
  %vm139 = vcmask 1040448
  %140 = vst.msk [vmem:[#allocation2 + $0x20] sm:$0x1] %vm139, %v128
  %vm141 = vcmask 57344
  %142 = vst.msk [vmem:[#allocation2 + $0x28] sm:$0x1] %vm141, %v128
  %v143 = vld [vmem:[#allocation2] sm:$0xff]
  %v144 = vld [vmem:[#allocation2 + $0x8] sm:$0xff]
  %v145 = vld [vmem:[#allocation2 + $0x10] sm:$0xff]
  %v146 = vld [vmem:[#allocation2 + $0x18] sm:$0xff]
  %v147 = vld [vmem:[#allocation2 + $0x20] sm:$0x3]
  %v148 = vld [vmem:[#allocation2 + $0x28] sm:$0x3]
  %v149 = vld [vmem:[%s3] sm:$0x1]
  %v150 = vlaneseq
  %v151 = vshrl.u32 %v150, 7
  %v152 = vsub.s32 0, %v151
  %v153 = vrot.slane %v149, %v152
  %155 = vrot.lane.b32.xlu0 %v153, 1
  %v156 = vpop.permute.xlu0 %155
  %v158 = vmul.f32 %v143, %v156
  %v159 = vmul.f32 %v144, %v156
  %v160 = vmul.f32 %v145, %v156
  %v161 = vmul.f32 %v146, %v156
  %166 = vrot.lane.b32.xlu0 %v158, 127
  %v167 = vpop.permute.xlu0 %166
  %168 = vrot.lane.b32.xlu0 %v159, 127
  %v169 = vpop.permute.xlu0 %168
  %170 = vrot.lane.b32.xlu0 %v160, 127
  %v171 = vpop.permute.xlu0 %170
  %172 = vrot.lane.b32.xlu0 %v161, 127
  %v173 = vpop.permute.xlu0 %172
  %vm174 = vcmask 1039360
  %v175 = vsel %vm174, %v167, %v169
  %v176 = vsel %vm174, %v171, %v173
  %v179 = vadd.f32 %v17, %v175
  %v180 = vadd.f32 %v18, %v176
  %v181 = vld [vmem:[%s3 + $0x1] sm:$0x1]
  %v182 = vlaneseq
  %v183 = vshrl.u32 %v182, 7
  %v184 = vsub.s32 0, %v183
  %v185 = vrot.slane %v181, %v184
  %187 = vrot.lane.b32.xlu0 %v185, 1
  %v188 = vpop.permute.xlu0 %187
  %v190 = vmul.f32 %v143, %v188
  %v191 = vmul.f32 %v144, %v188
  %v192 = vmul.f32 %v145, %v188
  %v193 = vmul.f32 %v146, %v188
  %v194 = vmul.f32 %v147, %v188
  %v195 = vmul.f32 %v148, %v188
  %vm202 = vcmask 1046528
  %v203 = vrot.slane %v190, 1
  %v204 = vrot.slane %v192, 1
  %v205 = vsel %vm202, %v203, %v204
  %v206 = vrot.slane %v191, 1
  %v207 = vrot.slane %v193, 1
  %v208 = vsel %vm202, %v206, %v207
  %v209 = vrot.slane %v194, 1
  %v210 = vsel %vm202, %v204, %v209
  %v211 = vrot.slane %v195, 1
  %v212 = vsel %vm202, %v207, %v211
  %213 = vrot.lane.b32.xlu0 %v205, 127
  %v214 = vpop.permute.xlu0 %213
  %215 = vrot.lane.b32.xlu0 %v208, 127
  %v216 = vpop.permute.xlu0 %215
  %217 = vrot.lane.b32.xlu0 %v210, 127
  %v218 = vpop.permute.xlu0 %217
  %219 = vrot.lane.b32.xlu0 %v212, 127
  %v220 = vpop.permute.xlu0 %219
  %v221 = vsel %vm174, %v214, %v216
  %v222 = vsel %vm174, %v218, %v220
  %v225 = vadd.f32 %v179, %v221
  %v226 = vadd.f32 %v180, %v222
  %v227 = vld [vmem:[%s3 + $0x2] sm:$0x1]
  %v228 = vlaneseq
  %v229 = vshrl.u32 %v228, 7
  %v230 = vsub.s32 0, %v229
  %v231 = vrot.slane %v227, %v230
  %233 = vrot.lane.b32.xlu0 %v231, 1
  %v234 = vpop.permute.xlu0 %233
  %v236 = vmul.f32 %v143, %v234
  %v237 = vmul.f32 %v144, %v234
  %v238 = vmul.f32 %v145, %v234
  %v239 = vmul.f32 %v146, %v234
  %v240 = vmul.f32 %v147, %v234
  %v241 = vmul.f32 %v148, %v234
  %vm248 = vcmask 1045504
  %v249 = vrot.slane %v236, 2
  %v250 = vrot.slane %v238, 2
  %v251 = vsel %vm248, %v249, %v250
  %v252 = vrot.slane %v237, 2
  %v253 = vrot.slane %v239, 2
  %v254 = vsel %vm248, %v252, %v253
  %v255 = vrot.slane %v240, 2
  %v256 = vsel %vm248, %v250, %v255
  %v257 = vrot.slane %v241, 2
  %v258 = vsel %vm248, %v253, %v257
  %259 = vrot.lane.b32.xlu0 %v251, 127
  %v260 = vpop.permute.xlu0 %259
  %261 = vrot.lane.b32.xlu0 %v254, 127
  %v262 = vpop.permute.xlu0 %261
  %263 = vrot.lane.b32.xlu0 %v256, 127
  %v264 = vpop.permute.xlu0 %263
  %265 = vrot.lane.b32.xlu0 %v258, 127
  %v266 = vpop.permute.xlu0 %265
  %v267 = vsel %vm174, %v260, %v262
  %v268 = vsel %vm174, %v264, %v266
  %v271 = vadd.f32 %v225, %v267
  %v272 = vadd.f32 %v226, %v268
  %v273 = vld [vmem:[%s3 + $0x3] sm:$0x1]
  %v274 = vlaneseq
  %v275 = vshrl.u32 %v274, 7
  %v276 = vsub.s32 0, %v275
  %v277 = vrot.slane %v273, %v276
  %279 = vrot.lane.b32.xlu0 %v277, 2
  %v280 = vpop.permute.xlu0 %279
  %v282 = vmul.f32 %v143, %v280
  %v283 = vmul.f32 %v144, %v280
  %v284 = vmul.f32 %v145, %v280
  %v285 = vmul.f32 %v146, %v280
  %290 = vrot.lane.b32.xlu0 %v282, 126
  %v291 = vpop.permute.xlu0 %290
  %292 = vrot.lane.b32.xlu0 %v283, 126
  %v293 = vpop.permute.xlu0 %292
  %294 = vrot.lane.b32.xlu0 %v284, 126
  %v295 = vpop.permute.xlu0 %294
  %296 = vrot.lane.b32.xlu0 %v285, 126
  %v297 = vpop.permute.xlu0 %296
  %vm298 = vcmask 1031168
  %v299 = vsel %vm298, %v291, %v293
  %v300 = vsel %vm298, %v295, %v297
  %v303 = vadd.f32 %v271, %v299
  %v304 = vadd.f32 %v272, %v300
  %v305 = vld [vmem:[%s3 + $0x4] sm:$0x1]
  %v306 = vlaneseq
  %v307 = vshrl.u32 %v306, 7
  %v308 = vsub.s32 0, %v307
  %v309 = vrot.slane %v305, %v308
  %311 = vrot.lane.b32.xlu0 %v309, 2
  %v312 = vpop.permute.xlu0 %311
  %v314 = vmul.f32 %v143, %v312
  %v315 = vmul.f32 %v144, %v312
  %v316 = vmul.f32 %v145, %v312
  %v317 = vmul.f32 %v146, %v312
  %v318 = vmul.f32 %v147, %v312
  %v319 = vmul.f32 %v148, %v312
  %v326 = vrot.slane %v314, 1
  %v327 = vrot.slane %v316, 1
  %v328 = vsel %vm202, %v326, %v327
  %v329 = vrot.slane %v315, 1
  %v330 = vrot.slane %v317, 1
  %v331 = vsel %vm202, %v329, %v330
  %v332 = vrot.slane %v318, 1
  %v333 = vsel %vm202, %v327, %v332
  %v334 = vrot.slane %v319, 1
  %v335 = vsel %vm202, %v330, %v334
  %336 = vrot.lane.b32.xlu0 %v328, 126
  %v337 = vpop.permute.xlu0 %336
  %338 = vrot.lane.b32.xlu0 %v331, 126
  %v339 = vpop.permute.xlu0 %338
  %340 = vrot.lane.b32.xlu0 %v333, 126
  %v341 = vpop.permute.xlu0 %340
  %342 = vrot.lane.b32.xlu0 %v335, 126
  %v343 = vpop.permute.xlu0 %342
  %v344 = vsel %vm298, %v337, %v339
  %v345 = vsel %vm298, %v341, %v343
  %v348 = vadd.f32 %v303, %v344
  %v349 = vadd.f32 %v304, %v345
  %v350 = vld [vmem:[%s3 + $0x5] sm:$0x1]
  %v351 = vlaneseq
  %v352 = vshrl.u32 %v351, 7
  %v353 = vsub.s32 0, %v352
  %v354 = vrot.slane %v350, %v353
  %356 = vrot.lane.b32.xlu0 %v354, 2
  %v357 = vpop.permute.xlu0 %356
  %v359 = vmul.f32 %v143, %v357
  %v360 = vmul.f32 %v144, %v357
  %v361 = vmul.f32 %v145, %v357
  %v362 = vmul.f32 %v146, %v357
  %v363 = vmul.f32 %v147, %v357
  %v364 = vmul.f32 %v148, %v357
  %v371 = vrot.slane %v359, 2
  %v372 = vrot.slane %v361, 2
  %v373 = vsel %vm248, %v371, %v372
  %v374 = vrot.slane %v360, 2
  %v375 = vrot.slane %v362, 2
  %v376 = vsel %vm248, %v374, %v375
  %v377 = vrot.slane %v363, 2
  %v378 = vsel %vm248, %v372, %v377
  %v379 = vrot.slane %v364, 2
  %v380 = vsel %vm248, %v375, %v379
  %381 = vrot.lane.b32.xlu0 %v373, 126
  %v382 = vpop.permute.xlu0 %381
  %383 = vrot.lane.b32.xlu0 %v376, 126
  %v384 = vpop.permute.xlu0 %383
  %385 = vrot.lane.b32.xlu0 %v378, 126
  %v386 = vpop.permute.xlu0 %385
  %387 = vrot.lane.b32.xlu0 %v380, 126
  %v388 = vpop.permute.xlu0 %387
  %v389 = vsel %vm298, %v382, %v384
  %v390 = vsel %vm298, %v386, %v388
  %v393 = vadd.f32 %v348, %v389
  %v394 = vadd.f32 %v349, %v390
  %v395 = vld [vmem:[%s3 + $0x6] sm:$0x1]
  %v396 = vlaneseq
  %v397 = vshrl.u32 %v396, 7
  %v398 = vsub.s32 0, %v397
  %v399 = vrot.slane %v395, %v398
  %401 = vrot.lane.b32.xlu0 %v399, 3
  %v402 = vpop.permute.xlu0 %401
  %v404 = vmul.f32 %v143, %v402
  %v405 = vmul.f32 %v144, %v402
  %v406 = vmul.f32 %v145, %v402
  %v407 = vmul.f32 %v146, %v402
  %412 = vrot.lane.b32.xlu0 %v404, 125
  %v413 = vpop.permute.xlu0 %412
  %414 = vrot.lane.b32.xlu0 %v405, 125
  %v415 = vpop.permute.xlu0 %414
  %416 = vrot.lane.b32.xlu0 %v406, 125
  %v417 = vpop.permute.xlu0 %416
  %418 = vrot.lane.b32.xlu0 %v407, 125
  %v419 = vpop.permute.xlu0 %418
  %vm420 = vcmask 1022976
  %v421 = vsel %vm420, %v413, %v415
  %v422 = vsel %vm420, %v417, %v419
  %v425 = vadd.f32 %v393, %v421
  %v426 = vadd.f32 %v394, %v422
  %v427 = vld [vmem:[%s3 + $0x7] sm:$0x1]
  %v428 = vlaneseq
  %v429 = vshrl.u32 %v428, 7
  %v430 = vsub.s32 0, %v429
  %v431 = vrot.slane %v427, %v430
  %433 = vrot.lane.b32.xlu0 %v431, 3
  %v434 = vpop.permute.xlu0 %433
  %v436 = vmul.f32 %v143, %v434
  %v437 = vmul.f32 %v144, %v434
  %v438 = vmul.f32 %v145, %v434
  %v439 = vmul.f32 %v146, %v434
  %v440 = vmul.f32 %v147, %v434
  %v441 = vmul.f32 %v148, %v434
  %v448 = vrot.slane %v436, 1
  %v449 = vrot.slane %v438, 1
  %v450 = vsel %vm202, %v448, %v449
  %v451 = vrot.slane %v437, 1
  %v452 = vrot.slane %v439, 1
  %v453 = vsel %vm202, %v451, %v452
  %v454 = vrot.slane %v440, 1
  %v455 = vsel %vm202, %v449, %v454
  %v456 = vrot.slane %v441, 1
  %v457 = vsel %vm202, %v452, %v456
  %458 = vrot.lane.b32.xlu0 %v450, 125
  %v459 = vpop.permute.xlu0 %458
  %460 = vrot.lane.b32.xlu0 %v453, 125
  %v461 = vpop.permute.xlu0 %460
  %462 = vrot.lane.b32.xlu0 %v455, 125
  %v463 = vpop.permute.xlu0 %462
  %464 = vrot.lane.b32.xlu0 %v457, 125
  %v465 = vpop.permute.xlu0 %464
  %v466 = vsel %vm420, %v459, %v461
  %v467 = vsel %vm420, %v463, %v465
  %v470 = vadd.f32 %v425, %v466
  %v471 = vadd.f32 %v426, %v467
  %v472 = vld [vmem:[%s3 + $0x8] sm:$0x1]
  %v473 = vlaneseq
  %v474 = vshrl.u32 %v473, 7
  %v475 = vsub.s32 0, %v474
  %v476 = vrot.slane %v472, %v475
  %478 = vrot.lane.b32.xlu0 %v476, 3
  %v479 = vpop.permute.xlu0 %478
  %v481 = vmul.f32 %v143, %v479
  %v482 = vmul.f32 %v144, %v479
  %v483 = vmul.f32 %v145, %v479
  %v484 = vmul.f32 %v146, %v479
  %v485 = vmul.f32 %v147, %v479
  %v486 = vmul.f32 %v148, %v479
  %v493 = vrot.slane %v481, 2
  %v494 = vrot.slane %v483, 2
  %v495 = vsel %vm248, %v493, %v494
  %v496 = vrot.slane %v482, 2
  %v497 = vrot.slane %v484, 2
  %v498 = vsel %vm248, %v496, %v497
  %v499 = vrot.slane %v485, 2
  %v500 = vsel %vm248, %v494, %v499
  %v501 = vrot.slane %v486, 2
  %v502 = vsel %vm248, %v497, %v501
  %503 = vrot.lane.b32.xlu0 %v495, 125
  %v504 = vpop.permute.xlu0 %503
  %505 = vrot.lane.b32.xlu0 %v498, 125
  %v506 = vpop.permute.xlu0 %505
  %507 = vrot.lane.b32.xlu0 %v500, 125
  %v508 = vpop.permute.xlu0 %507
  %509 = vrot.lane.b32.xlu0 %v502, 125
  %v510 = vpop.permute.xlu0 %509
  %v511 = vsel %vm420, %v504, %v506
  %v512 = vsel %vm420, %v508, %v510
  %v515 = vadd.f32 %v470, %v511
  %v516 = vadd.f32 %v471, %v512
  %v517 = vld [vmem:[%s3 + $0x9] sm:$0x1]
  %v518 = vlaneseq
  %v519 = vshrl.u32 %v518, 7
  %v520 = vsub.s32 0, %v519
  %v521 = vrot.slane %v517, %v520
  %523 = vrot.lane.b32.xlu0 %v521, 4
  %v524 = vpop.permute.xlu0 %523
  %v526 = vmul.f32 %v143, %v524
  %v527 = vmul.f32 %v144, %v524
  %v528 = vmul.f32 %v145, %v524
  %v529 = vmul.f32 %v146, %v524
  %534 = vrot.lane.b32.xlu0 %v526, 124
  %v535 = vpop.permute.xlu0 %534
  %536 = vrot.lane.b32.xlu0 %v527, 124
  %v537 = vpop.permute.xlu0 %536
  %538 = vrot.lane.b32.xlu0 %v528, 124
  %v539 = vpop.permute.xlu0 %538
  %540 = vrot.lane.b32.xlu0 %v529, 124
  %v541 = vpop.permute.xlu0 %540
  %vm542 = vcmask 1014784
  %v543 = vsel %vm542, %v535, %v537
  %v544 = vsel %vm542, %v539, %v541
  %v547 = vadd.f32 %v515, %v543
  %v548 = vadd.f32 %v516, %v544
  %v549 = vld [vmem:[%s3 + $0xa] sm:$0x1]
  %v550 = vlaneseq
  %v551 = vshrl.u32 %v550, 7
  %v552 = vsub.s32 0, %v551
  %v553 = vrot.slane %v549, %v552
  %555 = vrot.lane.b32.xlu0 %v553, 4
  %v556 = vpop.permute.xlu0 %555
  %v558 = vmul.f32 %v143, %v556
  %v559 = vmul.f32 %v144, %v556
  %v560 = vmul.f32 %v145, %v556
  %v561 = vmul.f32 %v146, %v556
  %v562 = vmul.f32 %v147, %v556
  %v563 = vmul.f32 %v148, %v556
  %v570 = vrot.slane %v558, 1
  %v571 = vrot.slane %v560, 1
  %v572 = vsel %vm202, %v570, %v571
  %v573 = vrot.slane %v559, 1
  %v574 = vrot.slane %v561, 1
  %v575 = vsel %vm202, %v573, %v574
  %v576 = vrot.slane %v562, 1
  %v577 = vsel %vm202, %v571, %v576
  %v578 = vrot.slane %v563, 1
  %v579 = vsel %vm202, %v574, %v578
  %580 = vrot.lane.b32.xlu0 %v572, 124
  %v581 = vpop.permute.xlu0 %580
  %582 = vrot.lane.b32.xlu0 %v575, 124
  %v583 = vpop.permute.xlu0 %582
  %584 = vrot.lane.b32.xlu0 %v577, 124
  %v585 = vpop.permute.xlu0 %584
  %586 = vrot.lane.b32.xlu0 %v579, 124
  %v587 = vpop.permute.xlu0 %586
  %v588 = vsel %vm542, %v581, %v583
  %v589 = vsel %vm542, %v585, %v587
  %v592 = vadd.f32 %v547, %v588
  %v593 = vadd.f32 %v548, %v589
  %v594 = vld [vmem:[%s3 + $0xb] sm:$0x1]
  %v595 = vlaneseq
  %v596 = vshrl.u32 %v595, 7
  %v597 = vsub.s32 0, %v596
  %v598 = vrot.slane %v594, %v597
  %600 = vrot.lane.b32.xlu0 %v598, 4
  %v601 = vpop.permute.xlu0 %600
  %v603 = vmul.f32 %v143, %v601
  %v604 = vmul.f32 %v144, %v601
  %v605 = vmul.f32 %v145, %v601
  %v606 = vmul.f32 %v146, %v601
  %v607 = vmul.f32 %v147, %v601
  %v608 = vmul.f32 %v148, %v601
  %v615 = vrot.slane %v603, 2
  %v616 = vrot.slane %v605, 2
  %v617 = vsel %vm248, %v615, %v616
  %v618 = vrot.slane %v604, 2
  %v619 = vrot.slane %v606, 2
  %v620 = vsel %vm248, %v618, %v619
  %v621 = vrot.slane %v607, 2
  %v622 = vsel %vm248, %v616, %v621
  %v623 = vrot.slane %v608, 2
  %v624 = vsel %vm248, %v619, %v623
  %625 = vrot.lane.b32.xlu0 %v617, 124
  %v626 = vpop.permute.xlu0 %625
  %627 = vrot.lane.b32.xlu0 %v620, 124
  %v628 = vpop.permute.xlu0 %627
  %629 = vrot.lane.b32.xlu0 %v622, 124
  %v630 = vpop.permute.xlu0 %629
  %631 = vrot.lane.b32.xlu0 %v624, 124
  %v632 = vpop.permute.xlu0 %631
  %v633 = vsel %vm542, %v626, %v628
  %v634 = vsel %vm542, %v630, %v632
  %v637 = vadd.f32 %v592, %v633
  %v638 = vadd.f32 %v593, %v634
  %v639 = vld [vmem:[%s3 + $0xc] sm:$0x1]
  %v640 = vlaneseq
  %v641 = vshrl.u32 %v640, 7
  %v642 = vsub.s32 0, %v641
  %v643 = vrot.slane %v639, %v642
  %645 = vrot.lane.b32.xlu0 %v643, 5
  %v646 = vpop.permute.xlu0 %645
  %v648 = vmul.f32 %v143, %v646
  %v649 = vmul.f32 %v144, %v646
  %v650 = vmul.f32 %v145, %v646
  %v651 = vmul.f32 %v146, %v646
  %656 = vrot.lane.b32.xlu0 %v648, 123
  %v657 = vpop.permute.xlu0 %656
  %658 = vrot.lane.b32.xlu0 %v649, 123
  %v659 = vpop.permute.xlu0 %658
  %660 = vrot.lane.b32.xlu0 %v650, 123
  %v661 = vpop.permute.xlu0 %660
  %662 = vrot.lane.b32.xlu0 %v651, 123
  %v663 = vpop.permute.xlu0 %662
  %vm664 = vcmask 1006592
  %v665 = vsel %vm664, %v657, %v659
  %v666 = vsel %vm664, %v661, %v663
  %v669 = vadd.f32 %v637, %v665
  %v670 = vadd.f32 %v638, %v666
  %v671 = vld [vmem:[%s3 + $0xd] sm:$0x1]
  %v672 = vlaneseq
  %v673 = vshrl.u32 %v672, 7
  %v674 = vsub.s32 0, %v673
  %v675 = vrot.slane %v671, %v674
  %677 = vrot.lane.b32.xlu0 %v675, 5
  %v678 = vpop.permute.xlu0 %677
  %v680 = vmul.f32 %v143, %v678
  %v681 = vmul.f32 %v144, %v678
  %v682 = vmul.f32 %v145, %v678
  %v683 = vmul.f32 %v146, %v678
  %v684 = vmul.f32 %v147, %v678
  %v685 = vmul.f32 %v148, %v678
  %v692 = vrot.slane %v680, 1
  %v693 = vrot.slane %v682, 1
  %v694 = vsel %vm202, %v692, %v693
  %v695 = vrot.slane %v681, 1
  %v696 = vrot.slane %v683, 1
  %v697 = vsel %vm202, %v695, %v696
  %v698 = vrot.slane %v684, 1
  %v699 = vsel %vm202, %v693, %v698
  %v700 = vrot.slane %v685, 1
  %v701 = vsel %vm202, %v696, %v700
  %702 = vrot.lane.b32.xlu0 %v694, 123
  %v703 = vpop.permute.xlu0 %702
  %704 = vrot.lane.b32.xlu0 %v697, 123
  %v705 = vpop.permute.xlu0 %704
  %706 = vrot.lane.b32.xlu0 %v699, 123
  %v707 = vpop.permute.xlu0 %706
  %708 = vrot.lane.b32.xlu0 %v701, 123
  %v709 = vpop.permute.xlu0 %708
  %v710 = vsel %vm664, %v703, %v705
  %v711 = vsel %vm664, %v707, %v709
  %v714 = vadd.f32 %v669, %v710
  %v715 = vadd.f32 %v670, %v711
  %v716 = vld [vmem:[%s3 + $0xe] sm:$0x1]
  %v717 = vlaneseq
  %v718 = vshrl.u32 %v717, 7
  %v719 = vsub.s32 0, %v718
  %v720 = vrot.slane %v716, %v719
  %722 = vrot.lane.b32.xlu0 %v720, 5
  %v723 = vpop.permute.xlu0 %722
  %v725 = vmul.f32 %v143, %v723
  %v726 = vmul.f32 %v144, %v723
  %v727 = vmul.f32 %v145, %v723
  %v728 = vmul.f32 %v146, %v723
  %v729 = vmul.f32 %v147, %v723
  %v730 = vmul.f32 %v148, %v723
  %v737 = vrot.slane %v725, 2
  %v738 = vrot.slane %v727, 2
  %v739 = vsel %vm248, %v737, %v738
  %v740 = vrot.slane %v726, 2
  %v741 = vrot.slane %v728, 2
  %v742 = vsel %vm248, %v740, %v741
  %v743 = vrot.slane %v729, 2
  %v744 = vsel %vm248, %v738, %v743
  %v745 = vrot.slane %v730, 2
  %v746 = vsel %vm248, %v741, %v745
  %747 = vrot.lane.b32.xlu0 %v739, 123
  %v748 = vpop.permute.xlu0 %747
  %749 = vrot.lane.b32.xlu0 %v742, 123
  %v750 = vpop.permute.xlu0 %749
  %751 = vrot.lane.b32.xlu0 %v744, 123
  %v752 = vpop.permute.xlu0 %751
  %753 = vrot.lane.b32.xlu0 %v746, 123
  %v754 = vpop.permute.xlu0 %753
  %v755 = vsel %vm664, %v748, %v750
  %v756 = vsel %vm664, %v752, %v754
  %v759 = vadd.f32 %v714, %v755
  %v760 = vadd.f32 %v715, %v756
  %v761 = vld [vmem:[%s3 + $0xf] sm:$0x1]
  %v762 = vlaneseq
  %v763 = vshrl.u32 %v762, 7
  %v764 = vsub.s32 0, %v763
  %v765 = vrot.slane %v761, %v764
  %767 = vrot.lane.b32.xlu0 %v765, 6
  %v768 = vpop.permute.xlu0 %767
  %v770 = vmul.f32 %v143, %v768
  %v771 = vmul.f32 %v144, %v768
  %v772 = vmul.f32 %v145, %v768
  %v773 = vmul.f32 %v146, %v768
  %778 = vrot.lane.b32.xlu0 %v770, 122
  %v779 = vpop.permute.xlu0 %778
  %780 = vrot.lane.b32.xlu0 %v771, 122
  %v781 = vpop.permute.xlu0 %780
  %782 = vrot.lane.b32.xlu0 %v772, 122
  %v783 = vpop.permute.xlu0 %782
  %784 = vrot.lane.b32.xlu0 %v773, 122
  %v785 = vpop.permute.xlu0 %784
  %vm786 = vcmask 998400
  %v787 = vsel %vm786, %v779, %v781
  %v788 = vsel %vm786, %v783, %v785
  %v791 = vadd.f32 %v759, %v787
  %v792 = vadd.f32 %v760, %v788
  %v793 = vld [vmem:[%s3 + $0x10] sm:$0x1]
  %v794 = vlaneseq
  %v795 = vshrl.u32 %v794, 7
  %v796 = vsub.s32 0, %v795
  %v797 = vrot.slane %v793, %v796
  %799 = vrot.lane.b32.xlu0 %v797, 6
  %v800 = vpop.permute.xlu0 %799
  %v802 = vmul.f32 %v143, %v800
  %v803 = vmul.f32 %v144, %v800
  %v804 = vmul.f32 %v145, %v800
  %v805 = vmul.f32 %v146, %v800
  %v806 = vmul.f32 %v147, %v800
  %v807 = vmul.f32 %v148, %v800
  %v814 = vrot.slane %v802, 1
  %v815 = vrot.slane %v804, 1
  %v816 = vsel %vm202, %v814, %v815
  %v817 = vrot.slane %v803, 1
  %v818 = vrot.slane %v805, 1
  %v819 = vsel %vm202, %v817, %v818
  %v820 = vrot.slane %v806, 1
  %v821 = vsel %vm202, %v815, %v820
  %v822 = vrot.slane %v807, 1
  %v823 = vsel %vm202, %v818, %v822
  %824 = vrot.lane.b32.xlu0 %v816, 122
  %v825 = vpop.permute.xlu0 %824
  %826 = vrot.lane.b32.xlu0 %v819, 122
  %v827 = vpop.permute.xlu0 %826
  %828 = vrot.lane.b32.xlu0 %v821, 122
  %v829 = vpop.permute.xlu0 %828
  %830 = vrot.lane.b32.xlu0 %v823, 122
  %v831 = vpop.permute.xlu0 %830
  %v832 = vsel %vm786, %v825, %v827
  %v833 = vsel %vm786, %v829, %v831
  %v836 = vadd.f32 %v791, %v832
  %v837 = vadd.f32 %v792, %v833
  %v838 = vld [vmem:[%s3 + $0x11] sm:$0x1]
  %v839 = vlaneseq
  %v840 = vshrl.u32 %v839, 7
  %v841 = vsub.s32 0, %v840
  %v842 = vrot.slane %v838, %v841
  %844 = vrot.lane.b32.xlu0 %v842, 6
  %v845 = vpop.permute.xlu0 %844
  %v847 = vmul.f32 %v143, %v845
  %v848 = vmul.f32 %v144, %v845
  %v849 = vmul.f32 %v145, %v845
  %v850 = vmul.f32 %v146, %v845
  %v851 = vmul.f32 %v147, %v845
  %v852 = vmul.f32 %v148, %v845
  %v859 = vrot.slane %v847, 2
  %v860 = vrot.slane %v849, 2
  %v861 = vsel %vm248, %v859, %v860
  %v862 = vrot.slane %v848, 2
  %v863 = vrot.slane %v850, 2
  %v864 = vsel %vm248, %v862, %v863
  %v865 = vrot.slane %v851, 2
  %v866 = vsel %vm248, %v860, %v865
  %v867 = vrot.slane %v852, 2
  %v868 = vsel %vm248, %v863, %v867
  %869 = vrot.lane.b32.xlu0 %v861, 122
  %v870 = vpop.permute.xlu0 %869
  %871 = vrot.lane.b32.xlu0 %v864, 122
  %v872 = vpop.permute.xlu0 %871
  %873 = vrot.lane.b32.xlu0 %v866, 122
  %v874 = vpop.permute.xlu0 %873
  %875 = vrot.lane.b32.xlu0 %v868, 122
  %v876 = vpop.permute.xlu0 %875
  %v877 = vsel %vm786, %v870, %v872
  %v878 = vsel %vm786, %v874, %v876
  %v881 = vadd.f32 %v836, %v877
  %v882 = vadd.f32 %v837, %v878
  %v883 = vld [vmem:[%s3 + $0x12] sm:$0x1]
  %v884 = vlaneseq
  %v885 = vshrl.u32 %v884, 7
  %v886 = vsub.s32 0, %v885
  %v887 = vrot.slane %v883, %v886
  %889 = vrot.lane.b32.xlu0 %v887, 7
  %v890 = vpop.permute.xlu0 %889
  %v892 = vmul.f32 %v143, %v890
  %v893 = vmul.f32 %v144, %v890
  %v894 = vmul.f32 %v145, %v890
  %v895 = vmul.f32 %v146, %v890
  %900 = vrot.lane.b32.xlu0 %v892, 121
  %v901 = vpop.permute.xlu0 %900
  %902 = vrot.lane.b32.xlu0 %v893, 121
  %v903 = vpop.permute.xlu0 %902
  %904 = vrot.lane.b32.xlu0 %v894, 121
  %v905 = vpop.permute.xlu0 %904
  %906 = vrot.lane.b32.xlu0 %v895, 121
  %v907 = vpop.permute.xlu0 %906
  %vm908 = vcmask 990208
  %v909 = vsel %vm908, %v901, %v903
  %v910 = vsel %vm908, %v905, %v907
  %v913 = vadd.f32 %v881, %v909
  %v914 = vadd.f32 %v882, %v910
  %v915 = vld [vmem:[%s3 + $0x13] sm:$0x1]
  %v916 = vlaneseq
  %v917 = vshrl.u32 %v916, 7
  %v918 = vsub.s32 0, %v917
  %v919 = vrot.slane %v915, %v918
  %921 = vrot.lane.b32.xlu0 %v919, 7
  %v922 = vpop.permute.xlu0 %921
  %v924 = vmul.f32 %v143, %v922
  %v925 = vmul.f32 %v144, %v922
  %v926 = vmul.f32 %v145, %v922
  %v927 = vmul.f32 %v146, %v922
  %v928 = vmul.f32 %v147, %v922
  %v929 = vmul.f32 %v148, %v922
  %v936 = vrot.slane %v924, 1
  %v937 = vrot.slane %v926, 1
  %v938 = vsel %vm202, %v936, %v937
  %v939 = vrot.slane %v925, 1
  %v940 = vrot.slane %v927, 1
  %v941 = vsel %vm202, %v939, %v940
  %v942 = vrot.slane %v928, 1
  %v943 = vsel %vm202, %v937, %v942
  %v944 = vrot.slane %v929, 1
  %v945 = vsel %vm202, %v940, %v944
  %946 = vrot.lane.b32.xlu0 %v938, 121
  %v947 = vpop.permute.xlu0 %946
  %948 = vrot.lane.b32.xlu0 %v941, 121
  %v949 = vpop.permute.xlu0 %948
  %950 = vrot.lane.b32.xlu0 %v943, 121
  %v951 = vpop.permute.xlu0 %950
  %952 = vrot.lane.b32.xlu0 %v945, 121
  %v953 = vpop.permute.xlu0 %952
  %v954 = vsel %vm908, %v947, %v949
  %v955 = vsel %vm908, %v951, %v953
  %v958 = vadd.f32 %v913, %v954
  %v959 = vadd.f32 %v914, %v955
  %v960 = vld [vmem:[%s3 + $0x14] sm:$0x1]
  %v961 = vlaneseq
  %v962 = vshrl.u32 %v961, 7
  %v963 = vsub.s32 0, %v962
  %v964 = vrot.slane %v960, %v963
  %966 = vrot.lane.b32.xlu0 %v964, 7
  %v967 = vpop.permute.xlu0 %966
  %v969 = vmul.f32 %v143, %v967
  %v970 = vmul.f32 %v144, %v967
  %v971 = vmul.f32 %v145, %v967
  %v972 = vmul.f32 %v146, %v967
  %v973 = vmul.f32 %v147, %v967
  %v974 = vmul.f32 %v148, %v967
  %v981 = vrot.slane %v969, 2
  %v982 = vrot.slane %v971, 2
  %v983 = vsel %vm248, %v981, %v982
  %v984 = vrot.slane %v970, 2
  %v985 = vrot.slane %v972, 2
  %v986 = vsel %vm248, %v984, %v985
  %v987 = vrot.slane %v973, 2
  %v988 = vsel %vm248, %v982, %v987
  %v989 = vrot.slane %v974, 2
  %v990 = vsel %vm248, %v985, %v989
  %991 = vrot.lane.b32.xlu0 %v983, 121
  %v992 = vpop.permute.xlu0 %991
  %993 = vrot.lane.b32.xlu0 %v986, 121
  %v994 = vpop.permute.xlu0 %993
  %995 = vrot.lane.b32.xlu0 %v988, 121
  %v996 = vpop.permute.xlu0 %995
  %997 = vrot.lane.b32.xlu0 %v990, 121
  %v998 = vpop.permute.xlu0 %997
  %v999 = vsel %vm908, %v992, %v994
  %v1000 = vsel %vm908, %v996, %v998
  %v1003 = vadd.f32 %v958, %v999
  %v1004 = vadd.f32 %v959, %v1000
  %v1005 = vld [vmem:[%s3 + $0x15] sm:$0x1]
  %v1006 = vlaneseq
  %v1007 = vshrl.u32 %v1006, 7
  %v1008 = vsub.s32 0, %v1007
  %v1009 = vrot.slane %v1005, %v1008
  %1011 = vrot.lane.b32.xlu0 %v1009, 8
  %v1012 = vpop.permute.xlu0 %1011
  %v1014 = vmul.f32 %v143, %v1012
  %v1015 = vmul.f32 %v144, %v1012
  %v1016 = vmul.f32 %v145, %v1012
  %v1017 = vmul.f32 %v146, %v1012
  %1022 = vrot.lane.b32.xlu0 %v1014, 120
  %v1023 = vpop.permute.xlu0 %1022
  %1024 = vrot.lane.b32.xlu0 %v1015, 120
  %v1025 = vpop.permute.xlu0 %1024
  %1026 = vrot.lane.b32.xlu0 %v1016, 120
  %v1027 = vpop.permute.xlu0 %1026
  %1028 = vrot.lane.b32.xlu0 %v1017, 120
  %v1029 = vpop.permute.xlu0 %1028
  %vm1030 = vcmask 982016
  %v1031 = vsel %vm1030, %v1023, %v1025
  %v1032 = vsel %vm1030, %v1027, %v1029
  %v1035 = vadd.f32 %v1003, %v1031
  %v1036 = vadd.f32 %v1004, %v1032
  %v1037 = vld [vmem:[%s3 + $0x16] sm:$0x1]
  %v1038 = vlaneseq
  %v1039 = vshrl.u32 %v1038, 7
  %v1040 = vsub.s32 0, %v1039
  %v1041 = vrot.slane %v1037, %v1040
  %1043 = vrot.lane.b32.xlu0 %v1041, 8
  %v1044 = vpop.permute.xlu0 %1043
  %v1046 = vmul.f32 %v143, %v1044
  %v1047 = vmul.f32 %v144, %v1044
  %v1048 = vmul.f32 %v145, %v1044
  %v1049 = vmul.f32 %v146, %v1044
  %v1050 = vmul.f32 %v147, %v1044
  %v1051 = vmul.f32 %v148, %v1044
  %v1058 = vrot.slane %v1046, 1
  %v1059 = vrot.slane %v1048, 1
  %v1060 = vsel %vm202, %v1058, %v1059
  %v1061 = vrot.slane %v1047, 1
  %v1062 = vrot.slane %v1049, 1
  %v1063 = vsel %vm202, %v1061, %v1062
  %v1064 = vrot.slane %v1050, 1
  %v1065 = vsel %vm202, %v1059, %v1064
  %v1066 = vrot.slane %v1051, 1
  %v1067 = vsel %vm202, %v1062, %v1066
  %1068 = vrot.lane.b32.xlu0 %v1060, 120
  %v1069 = vpop.permute.xlu0 %1068
  %1070 = vrot.lane.b32.xlu0 %v1063, 120
  %v1071 = vpop.permute.xlu0 %1070
  %1072 = vrot.lane.b32.xlu0 %v1065, 120
  %v1073 = vpop.permute.xlu0 %1072
  %1074 = vrot.lane.b32.xlu0 %v1067, 120
  %v1075 = vpop.permute.xlu0 %1074
  %v1076 = vsel %vm1030, %v1069, %v1071
  %v1077 = vsel %vm1030, %v1073, %v1075
  %v1080 = vadd.f32 %v1035, %v1076
  %v1081 = vadd.f32 %v1036, %v1077
  %v1082 = vld [vmem:[%s3 + $0x17] sm:$0x1]
  %v1083 = vlaneseq
  %v1084 = vshrl.u32 %v1083, 7
  %v1085 = vsub.s32 0, %v1084
  %v1086 = vrot.slane %v1082, %v1085
  %1088 = vrot.lane.b32.xlu0 %v1086, 8
  %v1089 = vpop.permute.xlu0 %1088
  %v1091 = vmul.f32 %v143, %v1089
  %v1092 = vmul.f32 %v144, %v1089
  %v1093 = vmul.f32 %v145, %v1089
  %v1094 = vmul.f32 %v146, %v1089
  %v1095 = vmul.f32 %v147, %v1089
  %v1096 = vmul.f32 %v148, %v1089
  %v1103 = vrot.slane %v1091, 2
  %v1104 = vrot.slane %v1093, 2
  %v1105 = vsel %vm248, %v1103, %v1104
  %v1106 = vrot.slane %v1092, 2
  %v1107 = vrot.slane %v1094, 2
  %v1108 = vsel %vm248, %v1106, %v1107
  %v1109 = vrot.slane %v1095, 2
  %v1110 = vsel %vm248, %v1104, %v1109
  %v1111 = vrot.slane %v1096, 2
  %v1112 = vsel %vm248, %v1107, %v1111
  %1113 = vrot.lane.b32.xlu0 %v1105, 120
  %v1114 = vpop.permute.xlu0 %1113
  %1115 = vrot.lane.b32.xlu0 %v1108, 120
  %v1116 = vpop.permute.xlu0 %1115
  %1117 = vrot.lane.b32.xlu0 %v1110, 120
  %v1118 = vpop.permute.xlu0 %1117
  %1119 = vrot.lane.b32.xlu0 %v1112, 120
  %v1120 = vpop.permute.xlu0 %1119
  %v1121 = vsel %vm1030, %v1114, %v1116
  %v1122 = vsel %vm1030, %v1118, %v1120
  %v1125 = vadd.f32 %v1080, %v1121
  %v1126 = vadd.f32 %v1081, %v1122
  %v1127 = vld [vmem:[%s3 + $0x18] sm:$0x1]
  %v1128 = vlaneseq
  %v1129 = vshrl.u32 %v1128, 7
  %v1130 = vsub.s32 0, %v1129
  %v1131 = vrot.slane %v1127, %v1130
  %1133 = vrot.lane.b32.xlu0 %v1131, 9
  %v1134 = vpop.permute.xlu0 %1133
  %v1136 = vmul.f32 %v143, %v1134
  %v1137 = vmul.f32 %v144, %v1134
  %v1138 = vmul.f32 %v145, %v1134
  %v1139 = vmul.f32 %v146, %v1134
  %1144 = vrot.lane.b32.xlu0 %v1136, 119
  %v1145 = vpop.permute.xlu0 %1144
  %1146 = vrot.lane.b32.xlu0 %v1137, 119
  %v1147 = vpop.permute.xlu0 %1146
  %1148 = vrot.lane.b32.xlu0 %v1138, 119
  %v1149 = vpop.permute.xlu0 %1148
  %1150 = vrot.lane.b32.xlu0 %v1139, 119
  %v1151 = vpop.permute.xlu0 %1150
  %vm1152 = vcmask 973824
  %v1153 = vsel %vm1152, %v1145, %v1147
  %v1154 = vsel %vm1152, %v1149, %v1151
  %v1157 = vadd.f32 %v1125, %v1153
  %v1158 = vadd.f32 %v1126, %v1154
  %v1159 = vld [vmem:[%s3 + $0x19] sm:$0x1]
  %v1160 = vlaneseq
  %v1161 = vshrl.u32 %v1160, 7
  %v1162 = vsub.s32 0, %v1161
  %v1163 = vrot.slane %v1159, %v1162
  %1165 = vrot.lane.b32.xlu0 %v1163, 9
  %v1166 = vpop.permute.xlu0 %1165
  %v1168 = vmul.f32 %v143, %v1166
  %v1169 = vmul.f32 %v144, %v1166
  %v1170 = vmul.f32 %v145, %v1166
  %v1171 = vmul.f32 %v146, %v1166
  %v1172 = vmul.f32 %v147, %v1166
  %v1173 = vmul.f32 %v148, %v1166
  %v1180 = vrot.slane %v1168, 1
  %v1181 = vrot.slane %v1170, 1
  %v1182 = vsel %vm202, %v1180, %v1181
  %v1183 = vrot.slane %v1169, 1
  %v1184 = vrot.slane %v1171, 1
  %v1185 = vsel %vm202, %v1183, %v1184
  %v1186 = vrot.slane %v1172, 1
  %v1187 = vsel %vm202, %v1181, %v1186
  %v1188 = vrot.slane %v1173, 1
  %v1189 = vsel %vm202, %v1184, %v1188
  %1190 = vrot.lane.b32.xlu0 %v1182, 119
  %v1191 = vpop.permute.xlu0 %1190
  %1192 = vrot.lane.b32.xlu0 %v1185, 119
  %v1193 = vpop.permute.xlu0 %1192
  %1194 = vrot.lane.b32.xlu0 %v1187, 119
  %v1195 = vpop.permute.xlu0 %1194
  %1196 = vrot.lane.b32.xlu0 %v1189, 119
  %v1197 = vpop.permute.xlu0 %1196
  %v1198 = vsel %vm1152, %v1191, %v1193
  %v1199 = vsel %vm1152, %v1195, %v1197
  %v1202 = vadd.f32 %v1157, %v1198
  %v1203 = vadd.f32 %v1158, %v1199
  %v1204 = vld [vmem:[%s3 + $0x1a] sm:$0x1]
  %v1205 = vlaneseq
  %v1206 = vshrl.u32 %v1205, 7
  %v1207 = vsub.s32 0, %v1206
  %v1208 = vrot.slane %v1204, %v1207
  %1210 = vrot.lane.b32.xlu0 %v1208, 9
  %v1211 = vpop.permute.xlu0 %1210
  %v1213 = vmul.f32 %v143, %v1211
  %v1214 = vmul.f32 %v144, %v1211
  %v1215 = vmul.f32 %v145, %v1211
  %v1216 = vmul.f32 %v146, %v1211
  %v1217 = vmul.f32 %v147, %v1211
  %v1218 = vmul.f32 %v148, %v1211
  %v1225 = vrot.slane %v1213, 2
  %v1226 = vrot.slane %v1215, 2
  %v1227 = vsel %vm248, %v1225, %v1226
  %v1228 = vrot.slane %v1214, 2
  %v1229 = vrot.slane %v1216, 2
  %v1230 = vsel %vm248, %v1228, %v1229
  %v1231 = vrot.slane %v1217, 2
  %v1232 = vsel %vm248, %v1226, %v1231
  %v1233 = vrot.slane %v1218, 2
  %v1234 = vsel %vm248, %v1229, %v1233
  %1235 = vrot.lane.b32.xlu0 %v1227, 119
  %v1236 = vpop.permute.xlu0 %1235
  %1237 = vrot.lane.b32.xlu0 %v1230, 119
  %v1238 = vpop.permute.xlu0 %1237
  %1239 = vrot.lane.b32.xlu0 %v1232, 119
  %v1240 = vpop.permute.xlu0 %1239
  %1241 = vrot.lane.b32.xlu0 %v1234, 119
  %v1242 = vpop.permute.xlu0 %1241
  %v1243 = vsel %vm1152, %v1236, %v1238
  %v1244 = vsel %vm1152, %v1240, %v1242
  %v1247 = vadd.f32 %v1202, %v1243
  %v1248 = vadd.f32 %v1203, %v1244
  %v1249 = vld [vmem:[%s3 + $0x1b] sm:$0x1]
  %v1250 = vlaneseq
  %v1251 = vshrl.u32 %v1250, 7
  %v1252 = vsub.s32 0, %v1251
  %v1253 = vrot.slane %v1249, %v1252
  %1255 = vrot.lane.b32.xlu0 %v1253, 10
  %v1256 = vpop.permute.xlu0 %1255
  %v1258 = vmul.f32 %v143, %v1256
  %v1259 = vmul.f32 %v144, %v1256
  %v1260 = vmul.f32 %v145, %v1256
  %v1261 = vmul.f32 %v146, %v1256
  %1266 = vrot.lane.b32.xlu0 %v1258, 118
  %v1267 = vpop.permute.xlu0 %1266
  %1268 = vrot.lane.b32.xlu0 %v1259, 118
  %v1269 = vpop.permute.xlu0 %1268
  %1270 = vrot.lane.b32.xlu0 %v1260, 118
  %v1271 = vpop.permute.xlu0 %1270
  %1272 = vrot.lane.b32.xlu0 %v1261, 118
  %v1273 = vpop.permute.xlu0 %1272
  %vm1274 = vcmask 965632
  %v1275 = vsel %vm1274, %v1267, %v1269
  %v1276 = vsel %vm1274, %v1271, %v1273
  %v1279 = vadd.f32 %v1247, %v1275
  %v1280 = vadd.f32 %v1248, %v1276
  %v1281 = vld [vmem:[%s3 + $0x1c] sm:$0x1]
  %v1282 = vlaneseq
  %v1283 = vshrl.u32 %v1282, 7
  %v1284 = vsub.s32 0, %v1283
  %v1285 = vrot.slane %v1281, %v1284
  %1287 = vrot.lane.b32.xlu0 %v1285, 10
  %v1288 = vpop.permute.xlu0 %1287
  %v1290 = vmul.f32 %v143, %v1288
  %v1291 = vmul.f32 %v144, %v1288
  %v1292 = vmul.f32 %v145, %v1288
  %v1293 = vmul.f32 %v146, %v1288
  %v1294 = vmul.f32 %v147, %v1288
  %v1295 = vmul.f32 %v148, %v1288
  %v1302 = vrot.slane %v1290, 1
  %v1303 = vrot.slane %v1292, 1
  %v1304 = vsel %vm202, %v1302, %v1303
  %v1305 = vrot.slane %v1291, 1
  %v1306 = vrot.slane %v1293, 1
  %v1307 = vsel %vm202, %v1305, %v1306
  %v1308 = vrot.slane %v1294, 1
  %v1309 = vsel %vm202, %v1303, %v1308
  %v1310 = vrot.slane %v1295, 1
  %v1311 = vsel %vm202, %v1306, %v1310
  %1312 = vrot.lane.b32.xlu0 %v1304, 118
  %v1313 = vpop.permute.xlu0 %1312
  %1314 = vrot.lane.b32.xlu0 %v1307, 118
  %v1315 = vpop.permute.xlu0 %1314
  %1316 = vrot.lane.b32.xlu0 %v1309, 118
  %v1317 = vpop.permute.xlu0 %1316
  %1318 = vrot.lane.b32.xlu0 %v1311, 118
  %v1319 = vpop.permute.xlu0 %1318
  %v1320 = vsel %vm1274, %v1313, %v1315
  %v1321 = vsel %vm1274, %v1317, %v1319
  %v1324 = vadd.f32 %v1279, %v1320
  %v1325 = vadd.f32 %v1280, %v1321
  %v1326 = vld [vmem:[%s3 + $0x1d] sm:$0x1]
  %v1327 = vlaneseq
  %v1328 = vshrl.u32 %v1327, 7
  %v1329 = vsub.s32 0, %v1328
  %v1330 = vrot.slane %v1326, %v1329
  %1332 = vrot.lane.b32.xlu0 %v1330, 10
  %v1333 = vpop.permute.xlu0 %1332
  %v1335 = vmul.f32 %v143, %v1333
  %v1336 = vmul.f32 %v144, %v1333
  %v1337 = vmul.f32 %v145, %v1333
  %v1338 = vmul.f32 %v146, %v1333
  %v1339 = vmul.f32 %v147, %v1333
  %v1340 = vmul.f32 %v148, %v1333
  %v1347 = vrot.slane %v1335, 2
  %v1348 = vrot.slane %v1337, 2
  %v1349 = vsel %vm248, %v1347, %v1348
  %v1350 = vrot.slane %v1336, 2
  %v1351 = vrot.slane %v1338, 2
  %v1352 = vsel %vm248, %v1350, %v1351
  %v1353 = vrot.slane %v1339, 2
  %v1354 = vsel %vm248, %v1348, %v1353
  %v1355 = vrot.slane %v1340, 2
  %v1356 = vsel %vm248, %v1351, %v1355
  %1357 = vrot.lane.b32.xlu0 %v1349, 118
  %v1358 = vpop.permute.xlu0 %1357
  %1359 = vrot.lane.b32.xlu0 %v1352, 118
  %v1360 = vpop.permute.xlu0 %1359
  %1361 = vrot.lane.b32.xlu0 %v1354, 118
  %v1362 = vpop.permute.xlu0 %1361
  %1363 = vrot.lane.b32.xlu0 %v1356, 118
  %v1364 = vpop.permute.xlu0 %1363
  %v1365 = vsel %vm1274, %v1358, %v1360
  %v1366 = vsel %vm1274, %v1362, %v1364
  %v1369 = vadd.f32 %v1324, %v1365
  %v1370 = vadd.f32 %v1325, %v1366
  %v1371 = vld [vmem:[%s3 + $0x1e] sm:$0x1]
  %v1372 = vlaneseq
  %v1373 = vshrl.u32 %v1372, 7
  %v1374 = vsub.s32 0, %v1373
  %v1375 = vrot.slane %v1371, %v1374
  %1377 = vrot.lane.b32.xlu0 %v1375, 11
  %v1378 = vpop.permute.xlu0 %1377
  %v1380 = vmul.f32 %v143, %v1378
  %v1381 = vmul.f32 %v144, %v1378
  %v1382 = vmul.f32 %v145, %v1378
  %v1383 = vmul.f32 %v146, %v1378
  %1388 = vrot.lane.b32.xlu0 %v1380, 117
  %v1389 = vpop.permute.xlu0 %1388
  %1390 = vrot.lane.b32.xlu0 %v1381, 117
  %v1391 = vpop.permute.xlu0 %1390
  %1392 = vrot.lane.b32.xlu0 %v1382, 117
  %v1393 = vpop.permute.xlu0 %1392
  %1394 = vrot.lane.b32.xlu0 %v1383, 117
  %v1395 = vpop.permute.xlu0 %1394
  %vm1396 = vcmask 957440
  %v1397 = vsel %vm1396, %v1389, %v1391
  %v1398 = vsel %vm1396, %v1393, %v1395
  %v1401 = vadd.f32 %v1369, %v1397
  %v1402 = vadd.f32 %v1370, %v1398
  %v1403 = vld [vmem:[%s3 + $0x1f] sm:$0x1]
  %v1404 = vlaneseq
  %v1405 = vshrl.u32 %v1404, 7
  %v1406 = vsub.s32 0, %v1405
  %v1407 = vrot.slane %v1403, %v1406
  %1409 = vrot.lane.b32.xlu0 %v1407, 11
  %v1410 = vpop.permute.xlu0 %1409
  %v1412 = vmul.f32 %v143, %v1410
  %v1413 = vmul.f32 %v144, %v1410
  %v1414 = vmul.f32 %v145, %v1410
  %v1415 = vmul.f32 %v146, %v1410
  %v1416 = vmul.f32 %v147, %v1410
  %v1417 = vmul.f32 %v148, %v1410
  %v1424 = vrot.slane %v1412, 1
  %v1425 = vrot.slane %v1414, 1
  %v1426 = vsel %vm202, %v1424, %v1425
  %v1427 = vrot.slane %v1413, 1
  %v1428 = vrot.slane %v1415, 1
  %v1429 = vsel %vm202, %v1427, %v1428
  %v1430 = vrot.slane %v1416, 1
  %v1431 = vsel %vm202, %v1425, %v1430
  %v1432 = vrot.slane %v1417, 1
  %v1433 = vsel %vm202, %v1428, %v1432
  %1434 = vrot.lane.b32.xlu0 %v1426, 117
  %v1435 = vpop.permute.xlu0 %1434
  %1436 = vrot.lane.b32.xlu0 %v1429, 117
  %v1437 = vpop.permute.xlu0 %1436
  %1438 = vrot.lane.b32.xlu0 %v1431, 117
  %v1439 = vpop.permute.xlu0 %1438
  %1440 = vrot.lane.b32.xlu0 %v1433, 117
  %v1441 = vpop.permute.xlu0 %1440
  %v1442 = vsel %vm1396, %v1435, %v1437
  %v1443 = vsel %vm1396, %v1439, %v1441
  %v1446 = vadd.f32 %v1401, %v1442
  %v1447 = vadd.f32 %v1402, %v1443
  %v1448 = vld [vmem:[%s3 + $0x20] sm:$0x1]
  %v1449 = vlaneseq
  %v1450 = vshrl.u32 %v1449, 7
  %v1451 = vsub.s32 0, %v1450
  %v1452 = vrot.slane %v1448, %v1451
  %1454 = vrot.lane.b32.xlu0 %v1452, 11
  %v1455 = vpop.permute.xlu0 %1454
  %v1457 = vmul.f32 %v143, %v1455
  %v1458 = vmul.f32 %v144, %v1455
  %v1459 = vmul.f32 %v145, %v1455
  %v1460 = vmul.f32 %v146, %v1455
  %v1461 = vmul.f32 %v147, %v1455
  %v1462 = vmul.f32 %v148, %v1455
  %v1469 = vrot.slane %v1457, 2
  %v1470 = vrot.slane %v1459, 2
  %v1471 = vsel %vm248, %v1469, %v1470
  %v1472 = vrot.slane %v1458, 2
  %v1473 = vrot.slane %v1460, 2
  %v1474 = vsel %vm248, %v1472, %v1473
  %v1475 = vrot.slane %v1461, 2
  %v1476 = vsel %vm248, %v1470, %v1475
  %v1477 = vrot.slane %v1462, 2
  %v1478 = vsel %vm248, %v1473, %v1477
  %1479 = vrot.lane.b32.xlu0 %v1471, 117
  %v1480 = vpop.permute.xlu0 %1479
  %1481 = vrot.lane.b32.xlu0 %v1474, 117
  %v1482 = vpop.permute.xlu0 %1481
  %1483 = vrot.lane.b32.xlu0 %v1476, 117
  %v1484 = vpop.permute.xlu0 %1483
  %1485 = vrot.lane.b32.xlu0 %v1478, 117
  %v1486 = vpop.permute.xlu0 %1485
  %v1487 = vsel %vm1396, %v1480, %v1482
  %v1488 = vsel %vm1396, %v1484, %v1486
  %v1491 = vadd.f32 %v1446, %v1487
  %v1492 = vadd.f32 %v1447, %v1488
  %v1493 = vld [vmem:[%s3 + $0x21] sm:$0x1]
  %v1494 = vlaneseq
  %v1495 = vshrl.u32 %v1494, 7
  %v1496 = vsub.s32 0, %v1495
  %v1497 = vrot.slane %v1493, %v1496
  %1499 = vrot.lane.b32.xlu0 %v1497, 12
  %v1500 = vpop.permute.xlu0 %1499
  %v1502 = vmul.f32 %v143, %v1500
  %v1503 = vmul.f32 %v144, %v1500
  %v1504 = vmul.f32 %v145, %v1500
  %v1505 = vmul.f32 %v146, %v1500
  %1510 = vrot.lane.b32.xlu0 %v1502, 116
  %v1511 = vpop.permute.xlu0 %1510
  %1512 = vrot.lane.b32.xlu0 %v1503, 116
  %v1513 = vpop.permute.xlu0 %1512
  %1514 = vrot.lane.b32.xlu0 %v1504, 116
  %v1515 = vpop.permute.xlu0 %1514
  %1516 = vrot.lane.b32.xlu0 %v1505, 116
  %v1517 = vpop.permute.xlu0 %1516
  %vm1518 = vcmask 949248
  %v1519 = vsel %vm1518, %v1511, %v1513
  %v1520 = vsel %vm1518, %v1515, %v1517
  %v1523 = vadd.f32 %v1491, %v1519
  %v1524 = vadd.f32 %v1492, %v1520
  %v1525 = vld [vmem:[%s3 + $0x22] sm:$0x1]
  %v1526 = vlaneseq
  %v1527 = vshrl.u32 %v1526, 7
  %v1528 = vsub.s32 0, %v1527
  %v1529 = vrot.slane %v1525, %v1528
  %1531 = vrot.lane.b32.xlu0 %v1529, 12
  %v1532 = vpop.permute.xlu0 %1531
  %v1534 = vmul.f32 %v143, %v1532
  %v1535 = vmul.f32 %v144, %v1532
  %v1536 = vmul.f32 %v145, %v1532
  %v1537 = vmul.f32 %v146, %v1532
  %v1538 = vmul.f32 %v147, %v1532
  %v1539 = vmul.f32 %v148, %v1532
  %v1546 = vrot.slane %v1534, 1
  %v1547 = vrot.slane %v1536, 1
  %v1548 = vsel %vm202, %v1546, %v1547
  %v1549 = vrot.slane %v1535, 1
  %v1550 = vrot.slane %v1537, 1
  %v1551 = vsel %vm202, %v1549, %v1550
  %v1552 = vrot.slane %v1538, 1
  %v1553 = vsel %vm202, %v1547, %v1552
  %v1554 = vrot.slane %v1539, 1
  %v1555 = vsel %vm202, %v1550, %v1554
  %1556 = vrot.lane.b32.xlu0 %v1548, 116
  %v1557 = vpop.permute.xlu0 %1556
  %1558 = vrot.lane.b32.xlu0 %v1551, 116
  %v1559 = vpop.permute.xlu0 %1558
  %1560 = vrot.lane.b32.xlu0 %v1553, 116
  %v1561 = vpop.permute.xlu0 %1560
  %1562 = vrot.lane.b32.xlu0 %v1555, 116
  %v1563 = vpop.permute.xlu0 %1562
  %v1564 = vsel %vm1518, %v1557, %v1559
  %v1565 = vsel %vm1518, %v1561, %v1563
  %v1568 = vadd.f32 %v1523, %v1564
  %v1569 = vadd.f32 %v1524, %v1565
  %v1570 = vld [vmem:[%s3 + $0x23] sm:$0x1]
  %v1571 = vlaneseq
  %v1572 = vshrl.u32 %v1571, 7
  %v1573 = vsub.s32 0, %v1572
  %v1574 = vrot.slane %v1570, %v1573
  %1576 = vrot.lane.b32.xlu0 %v1574, 12
  %v1577 = vpop.permute.xlu0 %1576
  %v1579 = vmul.f32 %v143, %v1577
  %v1580 = vmul.f32 %v144, %v1577
  %v1581 = vmul.f32 %v145, %v1577
  %v1582 = vmul.f32 %v146, %v1577
  %v1583 = vmul.f32 %v147, %v1577
  %v1584 = vmul.f32 %v148, %v1577
  %v1591 = vrot.slane %v1579, 2
  %v1592 = vrot.slane %v1581, 2
  %v1593 = vsel %vm248, %v1591, %v1592
  %v1594 = vrot.slane %v1580, 2
  %v1595 = vrot.slane %v1582, 2
  %v1596 = vsel %vm248, %v1594, %v1595
  %v1597 = vrot.slane %v1583, 2
  %v1598 = vsel %vm248, %v1592, %v1597
  %v1599 = vrot.slane %v1584, 2
  %v1600 = vsel %vm248, %v1595, %v1599
  %1601 = vrot.lane.b32.xlu0 %v1593, 116
  %v1602 = vpop.permute.xlu0 %1601
  %1603 = vrot.lane.b32.xlu0 %v1596, 116
  %v1604 = vpop.permute.xlu0 %1603
  %1605 = vrot.lane.b32.xlu0 %v1598, 116
  %v1606 = vpop.permute.xlu0 %1605
  %1607 = vrot.lane.b32.xlu0 %v1600, 116
  %v1608 = vpop.permute.xlu0 %1607
  %v1609 = vsel %vm1518, %v1602, %v1604
  %v1610 = vsel %vm1518, %v1606, %v1608
  %v1613 = vadd.f32 %v1568, %v1609
  %v1614 = vadd.f32 %v1569, %v1610
  %v1615 = vld [vmem:[%s3 + $0x24] sm:$0x1]
  %v1616 = vlaneseq
  %v1617 = vshrl.u32 %v1616, 7
  %v1618 = vsub.s32 0, %v1617
  %v1619 = vrot.slane %v1615, %v1618
  %1621 = vrot.lane.b32.xlu0 %v1619, 13
  %v1622 = vpop.permute.xlu0 %1621
  %v1624 = vmul.f32 %v143, %v1622
  %v1625 = vmul.f32 %v144, %v1622
  %v1626 = vmul.f32 %v145, %v1622
  %v1627 = vmul.f32 %v146, %v1622
  %1632 = vrot.lane.b32.xlu0 %v1624, 115
  %v1633 = vpop.permute.xlu0 %1632
  %1634 = vrot.lane.b32.xlu0 %v1625, 115
  %v1635 = vpop.permute.xlu0 %1634
  %1636 = vrot.lane.b32.xlu0 %v1626, 115
  %v1637 = vpop.permute.xlu0 %1636
  %1638 = vrot.lane.b32.xlu0 %v1627, 115
  %v1639 = vpop.permute.xlu0 %1638
  %vm1640 = vcmask 941056
  %v1641 = vsel %vm1640, %v1633, %v1635
  %v1642 = vsel %vm1640, %v1637, %v1639
  %v1645 = vadd.f32 %v1613, %v1641
  %v1646 = vadd.f32 %v1614, %v1642
  %v1647 = vld [vmem:[%s3 + $0x25] sm:$0x1]
  %v1648 = vlaneseq
  %v1649 = vshrl.u32 %v1648, 7
  %v1650 = vsub.s32 0, %v1649
  %v1651 = vrot.slane %v1647, %v1650
  %1653 = vrot.lane.b32.xlu0 %v1651, 13
  %v1654 = vpop.permute.xlu0 %1653
  %v1656 = vmul.f32 %v143, %v1654
  %v1657 = vmul.f32 %v144, %v1654
  %v1658 = vmul.f32 %v145, %v1654
  %v1659 = vmul.f32 %v146, %v1654
  %v1660 = vmul.f32 %v147, %v1654
  %v1661 = vmul.f32 %v148, %v1654
  %v1668 = vrot.slane %v1656, 1
  %v1669 = vrot.slane %v1658, 1
  %v1670 = vsel %vm202, %v1668, %v1669
  %v1671 = vrot.slane %v1657, 1
  %v1672 = vrot.slane %v1659, 1
  %v1673 = vsel %vm202, %v1671, %v1672
  %v1674 = vrot.slane %v1660, 1
  %v1675 = vsel %vm202, %v1669, %v1674
  %v1676 = vrot.slane %v1661, 1
  %v1677 = vsel %vm202, %v1672, %v1676
  %1678 = vrot.lane.b32.xlu0 %v1670, 115
  %v1679 = vpop.permute.xlu0 %1678
  %1680 = vrot.lane.b32.xlu0 %v1673, 115
  %v1681 = vpop.permute.xlu0 %1680
  %1682 = vrot.lane.b32.xlu0 %v1675, 115
  %v1683 = vpop.permute.xlu0 %1682
  %1684 = vrot.lane.b32.xlu0 %v1677, 115
  %v1685 = vpop.permute.xlu0 %1684
  %v1686 = vsel %vm1640, %v1679, %v1681
  %v1687 = vsel %vm1640, %v1683, %v1685
  %v1690 = vadd.f32 %v1645, %v1686
  %v1691 = vadd.f32 %v1646, %v1687
  %v1692 = vld [vmem:[%s3 + $0x26] sm:$0x1]
  %v1693 = vlaneseq
  %v1694 = vshrl.u32 %v1693, 7
  %v1695 = vsub.s32 0, %v1694
  %v1696 = vrot.slane %v1692, %v1695
  %1698 = vrot.lane.b32.xlu0 %v1696, 13
  %v1699 = vpop.permute.xlu0 %1698
  %v1701 = vmul.f32 %v143, %v1699
  %v1702 = vmul.f32 %v144, %v1699
  %v1703 = vmul.f32 %v145, %v1699
  %v1704 = vmul.f32 %v146, %v1699
  %v1705 = vmul.f32 %v147, %v1699
  %v1706 = vmul.f32 %v148, %v1699
  %v1713 = vrot.slane %v1701, 2
  %v1714 = vrot.slane %v1703, 2
  %v1715 = vsel %vm248, %v1713, %v1714
  %v1716 = vrot.slane %v1702, 2
  %v1717 = vrot.slane %v1704, 2
  %v1718 = vsel %vm248, %v1716, %v1717
  %v1719 = vrot.slane %v1705, 2
  %v1720 = vsel %vm248, %v1714, %v1719
  %v1721 = vrot.slane %v1706, 2
  %v1722 = vsel %vm248, %v1717, %v1721
  %1723 = vrot.lane.b32.xlu0 %v1715, 115
  %v1724 = vpop.permute.xlu0 %1723
  %1725 = vrot.lane.b32.xlu0 %v1718, 115
  %v1726 = vpop.permute.xlu0 %1725
  %1727 = vrot.lane.b32.xlu0 %v1720, 115
  %v1728 = vpop.permute.xlu0 %1727
  %1729 = vrot.lane.b32.xlu0 %v1722, 115
  %v1730 = vpop.permute.xlu0 %1729
  %v1731 = vsel %vm1640, %v1724, %v1726
  %v1732 = vsel %vm1640, %v1728, %v1730
  %v1735 = vadd.f32 %v1690, %v1731
  %v1736 = vadd.f32 %v1691, %v1732
  %v1737 = vld [vmem:[%s3 + $0x27] sm:$0x1]
  %v1738 = vlaneseq
  %v1739 = vshrl.u32 %v1738, 7
  %v1740 = vsub.s32 0, %v1739
  %v1741 = vrot.slane %v1737, %v1740
  %1743 = vrot.lane.b32.xlu0 %v1741, 14
  %v1744 = vpop.permute.xlu0 %1743
  %v1746 = vmul.f32 %v143, %v1744
  %v1747 = vmul.f32 %v144, %v1744
  %v1748 = vmul.f32 %v145, %v1744
  %v1749 = vmul.f32 %v146, %v1744
  %1754 = vrot.lane.b32.xlu0 %v1746, 114
  %v1755 = vpop.permute.xlu0 %1754
  %1756 = vrot.lane.b32.xlu0 %v1747, 114
  %v1757 = vpop.permute.xlu0 %1756
  %1758 = vrot.lane.b32.xlu0 %v1748, 114
  %v1759 = vpop.permute.xlu0 %1758
  %1760 = vrot.lane.b32.xlu0 %v1749, 114
  %v1761 = vpop.permute.xlu0 %1760
  %vm1762 = vcmask 932864
  %v1763 = vsel %vm1762, %v1755, %v1757
  %v1764 = vsel %vm1762, %v1759, %v1761
  %v1767 = vadd.f32 %v1735, %v1763
  %v1768 = vadd.f32 %v1736, %v1764
  %v1769 = vld [vmem:[%s3 + $0x28] sm:$0x1]
  %v1770 = vlaneseq
  %v1771 = vshrl.u32 %v1770, 7
  %v1772 = vsub.s32 0, %v1771
  %v1773 = vrot.slane %v1769, %v1772
  %1775 = vrot.lane.b32.xlu0 %v1773, 14
  %v1776 = vpop.permute.xlu0 %1775
  %v1778 = vmul.f32 %v143, %v1776
  %v1779 = vmul.f32 %v144, %v1776
  %v1780 = vmul.f32 %v145, %v1776
  %v1781 = vmul.f32 %v146, %v1776
  %v1782 = vmul.f32 %v147, %v1776
  %v1783 = vmul.f32 %v148, %v1776
  %v1790 = vrot.slane %v1778, 1
  %v1791 = vrot.slane %v1780, 1
  %v1792 = vsel %vm202, %v1790, %v1791
  %v1793 = vrot.slane %v1779, 1
  %v1794 = vrot.slane %v1781, 1
  %v1795 = vsel %vm202, %v1793, %v1794
  %v1796 = vrot.slane %v1782, 1
  %v1797 = vsel %vm202, %v1791, %v1796
  %v1798 = vrot.slane %v1783, 1
  %v1799 = vsel %vm202, %v1794, %v1798
  %1800 = vrot.lane.b32.xlu0 %v1792, 114
  %v1801 = vpop.permute.xlu0 %1800
  %1802 = vrot.lane.b32.xlu0 %v1795, 114
  %v1803 = vpop.permute.xlu0 %1802
  %1804 = vrot.lane.b32.xlu0 %v1797, 114
  %v1805 = vpop.permute.xlu0 %1804
  %1806 = vrot.lane.b32.xlu0 %v1799, 114
  %v1807 = vpop.permute.xlu0 %1806
  %v1808 = vsel %vm1762, %v1801, %v1803
  %v1809 = vsel %vm1762, %v1805, %v1807
  %v1812 = vadd.f32 %v1767, %v1808
  %v1813 = vadd.f32 %v1768, %v1809
  %v1814 = vld [vmem:[%s3 + $0x29] sm:$0x1]
  %v1815 = vlaneseq
  %v1816 = vshrl.u32 %v1815, 7
  %v1817 = vsub.s32 0, %v1816
  %v1818 = vrot.slane %v1814, %v1817
  %1820 = vrot.lane.b32.xlu0 %v1818, 14
  %v1821 = vpop.permute.xlu0 %1820
  %v1823 = vmul.f32 %v143, %v1821
  %v1824 = vmul.f32 %v144, %v1821
  %v1825 = vmul.f32 %v145, %v1821
  %v1826 = vmul.f32 %v146, %v1821
  %v1827 = vmul.f32 %v147, %v1821
  %v1828 = vmul.f32 %v148, %v1821
  %v1835 = vrot.slane %v1823, 2
  %v1836 = vrot.slane %v1825, 2
  %v1837 = vsel %vm248, %v1835, %v1836
  %v1838 = vrot.slane %v1824, 2
  %v1839 = vrot.slane %v1826, 2
  %v1840 = vsel %vm248, %v1838, %v1839
  %v1841 = vrot.slane %v1827, 2
  %v1842 = vsel %vm248, %v1836, %v1841
  %v1843 = vrot.slane %v1828, 2
  %v1844 = vsel %vm248, %v1839, %v1843
  %1845 = vrot.lane.b32.xlu0 %v1837, 114
  %v1846 = vpop.permute.xlu0 %1845
  %1847 = vrot.lane.b32.xlu0 %v1840, 114
  %v1848 = vpop.permute.xlu0 %1847
  %1849 = vrot.lane.b32.xlu0 %v1842, 114
  %v1850 = vpop.permute.xlu0 %1849
  %1851 = vrot.lane.b32.xlu0 %v1844, 114
  %v1852 = vpop.permute.xlu0 %1851
  %v1853 = vsel %vm1762, %v1846, %v1848
  %v1854 = vsel %vm1762, %v1850, %v1852
  %v1857 = vadd.f32 %v1812, %v1853
  %v1858 = vadd.f32 %v1813, %v1854
  %v1859 = vld [vmem:[%s3 + $0x2a] sm:$0x1]
  %v1860 = vlaneseq
  %v1861 = vshrl.u32 %v1860, 7
  %v1862 = vsub.s32 0, %v1861
  %v1863 = vrot.slane %v1859, %v1862
  %1865 = vrot.lane.b32.xlu0 %v1863, 15
  %v1866 = vpop.permute.xlu0 %1865
  %v1868 = vmul.f32 %v143, %v1866
  %v1869 = vmul.f32 %v144, %v1866
  %v1870 = vmul.f32 %v145, %v1866
  %v1871 = vmul.f32 %v146, %v1866
  %1876 = vrot.lane.b32.xlu0 %v1868, 113
  %v1877 = vpop.permute.xlu0 %1876
  %1878 = vrot.lane.b32.xlu0 %v1869, 113
  %v1879 = vpop.permute.xlu0 %1878
  %1880 = vrot.lane.b32.xlu0 %v1870, 113
  %v1881 = vpop.permute.xlu0 %1880
  %1882 = vrot.lane.b32.xlu0 %v1871, 113
  %v1883 = vpop.permute.xlu0 %1882
  %vm1884 = vcmask 924672
  %v1885 = vsel %vm1884, %v1877, %v1879
  %v1886 = vsel %vm1884, %v1881, %v1883
  %v1889 = vadd.f32 %v1857, %v1885
  %v1890 = vadd.f32 %v1858, %v1886
  %v1891 = vld [vmem:[%s3 + $0x2b] sm:$0x1]
  %v1892 = vlaneseq
  %v1893 = vshrl.u32 %v1892, 7
  %v1894 = vsub.s32 0, %v1893
  %v1895 = vrot.slane %v1891, %v1894
  %1897 = vrot.lane.b32.xlu0 %v1895, 15
  %v1898 = vpop.permute.xlu0 %1897
  %v1900 = vmul.f32 %v143, %v1898
  %v1901 = vmul.f32 %v144, %v1898
  %v1902 = vmul.f32 %v145, %v1898
  %v1903 = vmul.f32 %v146, %v1898
  %v1904 = vmul.f32 %v147, %v1898
  %v1905 = vmul.f32 %v148, %v1898
  %v1912 = vrot.slane %v1900, 1
  %v1913 = vrot.slane %v1902, 1
  %v1914 = vsel %vm202, %v1912, %v1913
  %v1915 = vrot.slane %v1901, 1
  %v1916 = vrot.slane %v1903, 1
  %v1917 = vsel %vm202, %v1915, %v1916
  %v1918 = vrot.slane %v1904, 1
  %v1919 = vsel %vm202, %v1913, %v1918
  %v1920 = vrot.slane %v1905, 1
  %v1921 = vsel %vm202, %v1916, %v1920
  %1922 = vrot.lane.b32.xlu0 %v1914, 113
  %v1923 = vpop.permute.xlu0 %1922
  %1924 = vrot.lane.b32.xlu0 %v1917, 113
  %v1925 = vpop.permute.xlu0 %1924
  %1926 = vrot.lane.b32.xlu0 %v1919, 113
  %v1927 = vpop.permute.xlu0 %1926
  %1928 = vrot.lane.b32.xlu0 %v1921, 113
  %v1929 = vpop.permute.xlu0 %1928
  %v1930 = vsel %vm1884, %v1923, %v1925
  %v1931 = vsel %vm1884, %v1927, %v1929
  %v1934 = vadd.f32 %v1889, %v1930
  %v1935 = vadd.f32 %v1890, %v1931
  %v1936 = vld [vmem:[%s3 + $0x2c] sm:$0x1]
  %v1937 = vlaneseq
  %v1938 = vshrl.u32 %v1937, 7
  %v1939 = vsub.s32 0, %v1938
  %v1940 = vrot.slane %v1936, %v1939
  %1942 = vrot.lane.b32.xlu0 %v1940, 15
  %v1943 = vpop.permute.xlu0 %1942
  %v1945 = vmul.f32 %v143, %v1943
  %v1946 = vmul.f32 %v144, %v1943
  %v1947 = vmul.f32 %v145, %v1943
  %v1948 = vmul.f32 %v146, %v1943
  %v1949 = vmul.f32 %v147, %v1943
  %v1950 = vmul.f32 %v148, %v1943
  %v1957 = vrot.slane %v1945, 2
  %v1958 = vrot.slane %v1947, 2
  %v1959 = vsel %vm248, %v1957, %v1958
  %v1960 = vrot.slane %v1946, 2
  %v1961 = vrot.slane %v1948, 2
  %v1962 = vsel %vm248, %v1960, %v1961
  %v1963 = vrot.slane %v1949, 2
  %v1964 = vsel %vm248, %v1958, %v1963
  %v1965 = vrot.slane %v1950, 2
  %v1966 = vsel %vm248, %v1961, %v1965
  %1967 = vrot.lane.b32.xlu0 %v1959, 113
  %v1968 = vpop.permute.xlu0 %1967
  %1969 = vrot.lane.b32.xlu0 %v1962, 113
  %v1970 = vpop.permute.xlu0 %1969
  %1971 = vrot.lane.b32.xlu0 %v1964, 113
  %v1972 = vpop.permute.xlu0 %1971
  %1973 = vrot.lane.b32.xlu0 %v1966, 113
  %v1974 = vpop.permute.xlu0 %1973
  %v1975 = vsel %vm1884, %v1968, %v1970
  %v1976 = vsel %vm1884, %v1972, %v1974
  %v1979 = vadd.f32 %v1934, %v1975
  %v1980 = vadd.f32 %v1935, %v1976
  %1981 = vst [vmem:[%s4] sm:$0xff] %v1979
  %1982 = vst [vmem:[%s4 + $0x8] sm:$0xff] %v1980
  // Predicated region
  $region18: #{preact_block.1} parent=0 // pred_check
    _
  $region19: #{preact_block.1} parent=0 // pred_check_branch
    %1984 = sbr.rel (0) target = $region21
  $region20: #{preact_block.1} parent=0 // pred_region
    _
  $region21: #{preact_block.1} parent=0 // pred_fallthru
    _
  // Predicated region
  $region22: #{preact_block.1} parent=0 // pred_check
    _
  $region23: #{preact_block.1} parent=0 // pred_check_branch
    %1986 = sbr.rel (0) target = $region25
  $region24: #{preact_block.1} parent=0 // pred_region
    _
  $region25: #{preact_block.1} parent=0 // pred_fallthru
    _

</llo_original>
